<compile_context>
chip_gen: v7x
topology: tpu7x:2x2x1
jax: 0.10.0
libtpu: 0.0.40
codegen_flags: <defaults>
</compile_context>

<pallas_src>
import math

import jax
import jax.numpy as jnp
from jax.experimental import pallas as pl
from jax.experimental.pallas import tpu as pltpu

_VMEM_LIMIT = 64 * 1024 * 1024  # safe scoped-VMEM raise on v5e/v6e/v7x


def _pick_vocab_tile(V, d, max_bytes=8 * 1024 * 1024):
    """Largest lane-dense vocab tile dividing V whose double-buffered bf16 weight fits."""
    for t in (2048, 1024, 512, 256, 128):
        if V % t == 0 and 2 * d * t * 2 <= max_bytes:
            return t
    return V


# ------------------ fused decoder block + CALM check kernel ------------------

def _fused_layer_kernel(h_ref, wqkv_ref, bqkv_ref, wo_ref, bo_ref,
                        w1_ref, b1_ref, w2_ref, b2_ref, wlm_ref, blm_ref,
                        hout_ref, k_ref, v_ref, maxp_ref, amax_ref,
                        hlast_sc, m_sc, l_sc, a_sc):
    """grid = (V // tv,).  Vocab axis is 'arbitrary'; block outputs (constant index_map)
    stay resident in VMEM across the sweep, so the decoder block is computed once at j==0
    and the CALM online-softmax statistics accumulate over vocab tiles."""
    j = pl.program_id(0)
    bs, seq, d = h_ref.shape

    @pl.when(j == 0)
    def _():
        # ---------------- decoder block (runs once) ----------------
        h_bf = h_ref[...]                                   # (bs, seq, d) bf16
        h2d = h_bf.reshape(bs * seq, d)                     # flatten M for weight matmuls

        qkv = jnp.dot(h2d, wqkv_ref[...],
                      preferred_element_type=jnp.float32) + bqkv_ref[...]
        q = qkv[:, :d].reshape(bs, seq, d)
        k = qkv[:, d:2 * d].reshape(bs, seq, d)
        v = qkv[:, 2 * d:].reshape(bs, seq, d)
        q_bf = q.astype(jnp.bfloat16)
        k_bf = k.astype(jnp.bfloat16)
        v_bf = v.astype(jnp.bfloat16)

        # causal single-head attention (monolithic softmax: seq is small here).
        # TODO(synk): for production seq lengths switch to a KV-tiled online softmax.
        scale = 1.0 / math.sqrt(d)
        s = jnp.einsum('bqd,bkd->bqk', q_bf, k_bf,
                       preferred_element_type=jnp.float32) * scale
        row = jax.lax.broadcasted_iota(jnp.int32, (bs, seq, seq), 1)
        col = jax.lax.broadcasted_iota(jnp.int32, (bs, seq, seq), 2)
        s = jnp.where(row >= col, s, -1e30)
        m = jnp.max(s, axis=-1, keepdims=True)
        p = jnp.exp(s - m)
        p = p * pl.reciprocal(jnp.sum(p, axis=-1, keepdims=True), approx=True)
        a = jnp.einsum('bqk,bkd->bqd', p.astype(jnp.bfloat16), v_bf,
                       preferred_element_type=jnp.float32)

        a2d = a.reshape(bs * seq, d).astype(jnp.bfloat16)
        o = jnp.dot(a2d, wo_ref[...],
                    preferred_element_type=jnp.float32) + bo_ref[...]
        h1 = h2d.astype(jnp.float32) + o                    # residual 1 (f32)
        h1_bf = h1.astype(jnp.bfloat16)

        hmid = jnp.dot(h1_bf, w1_ref[...],
                       preferred_element_type=jnp.float32) + b1_ref[...]
        hmid = jax.nn.gelu(hmid)
        mo = jnp.dot(hmid.astype(jnp.bfloat16), w2_ref[...],
                     preferred_element_type=jnp.float32) + b2_ref[...]
        hout = (h1 + mo).reshape(bs, seq, d)                # residual 2 (f32)

        hout_ref[...] = hout.astype(hout_ref.dtype)
        k_ref[...] = k_bf
        v_ref[...] = v_bf
        hlast_sc[...] = hout[:, seq - 1, :].astype(hlast_sc.dtype)

        # init CALM online-softmax stats
        m_sc[...] = jnp.full(m_sc.shape, -jnp.inf, m_sc.dtype)
        l_sc[...] = jnp.zeros(l_sc.shape, l_sc.dtype)
        a_sc[...] = jnp.zeros(a_sc.shape, a_sc.dtype)

    # ---------------- CALM check: last-token logits over vocab tile j ----------------
    logits = jnp.dot(hlast_sc[...], wlm_ref[...],
                     preferred_element_type=jnp.float32) + blm_ref[...]   # (bs, tv) f32
    tv = logits.shape[-1]
    tile_max = jnp.max(logits, axis=-1, keepdims=True)                    # (bs, 1)
    col_ids = jax.lax.broadcasted_iota(jnp.int32, logits.shape, 1) + j * tv
    sentinel = jnp.iinfo(jnp.int32).max
    tile_arg = jnp.min(jnp.where(logits == tile_max, col_ids, sentinel),
                       axis=-1, keepdims=True)                            # first occurrence

    m_prev = m_sc[...]
    m_new = jnp.maximum(m_prev, tile_max)
    l_sc[...] = (l_sc[...] * jnp.exp(m_prev - m_new)
                 + jnp.sum(jnp.exp(logits - m_new), axis=-1, keepdims=True))
    a_sc[...] = jnp.where(tile_max > m_prev, tile_arg, a_sc[...])
    m_sc[...] = m_new

    @pl.when(j == pl.num_programs(0) - 1)
    def _():
        # softmax prob of the argmax logit = exp(max - max) / denom = 1 / denom (exact divide)
        maxp_ref[...] = 1.0 / l_sc[...]
        amax_ref[...] = a_sc[...]


def fused_layer(h, bp, w_lm, b_lm):
    """h: [bs, seq, d] bf16 -> (h_out bf16, k bf16, v bf16, max-prob [bs,1] f32,
    argmax token [bs,1] i32), single pallas_call per layer."""
    bs, seq, d = h.shape
    ffn = bp["w1"].shape[1]
    V = w_lm.shape[1]
    tv = _pick_vocab_tile(V, d)
    return pl.pallas_call(
        _fused_layer_kernel,
        out_shape=(jax.ShapeDtypeStruct((bs, seq, d), jnp.bfloat16),
                   jax.ShapeDtypeStruct((bs, seq, d), jnp.bfloat16),
                   jax.ShapeDtypeStruct((bs, seq, d), jnp.bfloat16),
                   jax.ShapeDtypeStruct((bs, 1), jnp.float32),
                   jax.ShapeDtypeStruct((bs, 1), jnp.int32)),
        grid=(V // tv,),
        in_specs=[
            pl.BlockSpec((bs, seq, d), lambda j: (0, 0, 0)),
            pl.BlockSpec((d, 3 * d), lambda j: (0, 0)),
            pl.BlockSpec((1, 3 * d), lambda j: (0, 0)),
            pl.BlockSpec((d, d), lambda j: (0, 0)),
            pl.BlockSpec((1, d), lambda j: (0, 0)),
            pl.BlockSpec((d, ffn), lambda j: (0, 0)),
            pl.BlockSpec((1, ffn), lambda j: (0, 0)),
            pl.BlockSpec((ffn, d), lambda j: (0, 0)),
            pl.BlockSpec((1, d), lambda j: (0, 0)),
            pl.BlockSpec((d, tv), lambda j: (0, j)),
            pl.BlockSpec((1, tv), lambda j: (0, j)),
        ],
        out_specs=(pl.BlockSpec((bs, seq, d), lambda j: (0, 0, 0)),
                   pl.BlockSpec((bs, seq, d), lambda j: (0, 0, 0)),
                   pl.BlockSpec((bs, seq, d), lambda j: (0, 0, 0)),
                   pl.BlockSpec((bs, 1), lambda j: (0, 0)),
                   pl.BlockSpec((bs, 1), lambda j: (0, 0))),
        scratch_shapes=[pltpu.VMEM((bs, d), jnp.bfloat16),
                        pltpu.VMEM((bs, 1), jnp.float32),
                        pltpu.VMEM((bs, 1), jnp.float32),
                        pltpu.VMEM((bs, 1), jnp.int32)],
        compiler_params=pltpu.CompilerParams(
            dimension_semantics=("arbitrary",),
            vmem_limit_bytes=_VMEM_LIMIT),
    )(h, bp["wqkv"], bp["bqkv"], bp["wo"], bp["bo"],
      bp["w1"], bp["b1"], bp["w2"], bp["b2"], w_lm, b_lm)


# ------------------------------ full lm_head ---------------------------------

def _lm_head_kernel(x_ref, w_ref, b_ref, o_ref):
    o_ref[...] = (jnp.dot(x_ref[...], w_ref[...],
                          preferred_element_type=jnp.float32)
                  + b_ref[...]).astype(o_ref.dtype)


def lm_head_full(x2d, w, b):
    """Full-sequence lm_head, tiled over vocab (only run when actually returning logits).
    Output kept f32 to preserve the reference module's logits semantics."""
    M, K = x2d.shape
    V = w.shape[1]
    tn = _pick_vocab_tile(V, K)
    return pl.pallas_call(
        _lm_head_kernel,
        out_shape=jax.ShapeDtypeStruct((M, V), jnp.float32),
        grid=(V // tn,),
        in_specs=[pl.BlockSpec((M, K), lambda j: (0, 0)),
                  pl.BlockSpec((K, tn), lambda j: (0, j)),
                  pl.BlockSpec((1, tn), lambda j: (0, j))],
        out_specs=pl.BlockSpec((M, tn), lambda j: (0, j)),
        compiler_params=pltpu.CompilerParams(
            dimension_semantics=("parallel",),
            vmem_limit_bytes=_VMEM_LIMIT),
    )(x2d, w, b)


# ------------------------ K/V-only projection (exit warm-up) -----------------

def _kv_kernel(h_ref, wkv_ref, bkv_ref, k_ref, v_ref):
    h = h_ref[0]                                  # (seq, d) bf16
    d = h.shape[-1]
    kv = jnp.dot(h, wkv_ref[...], preferred_element_type=jnp.float32) + bkv_ref[...]
    k_ref[0] = kv[:, :d].astype(k_ref.dtype)
    v_ref[0] = kv[:, d:].astype(v_ref.dtype)


def kv_projection(h, wkv, bkv):
    """K/V-only projection used to warm the kv cache of not-yet-run blocks on early exit."""
    bs, seq, d = h.shape
    return pl.pallas_call(
        _kv_kernel,
        out_shape=(jax.ShapeDtypeStruct((bs, seq, d), jnp.bfloat16),
                   jax.ShapeDtypeStruct((bs, seq, d), jnp.bfloat16)),
        grid=(bs,),
        in_specs=[pl.BlockSpec((1, seq, d), lambda b: (b, 0, 0)),
                  pl.BlockSpec((d, 2 * d), lambda b: (0, 0)),
                  pl.BlockSpec((1, 2 * d), lambda b: (0, 0))],
        out_specs=(pl.BlockSpec((1, seq, d), lambda b: (b, 0, 0)),
                   pl.BlockSpec((1, seq, d), lambda b: (b, 0, 0))),
        compiler_params=pltpu.CompilerParams(
            dimension_semantics=("parallel",),
            vmem_limit_bytes=_VMEM_LIMIT),
    )(h, wkv, bkv)


# ------------------------- deterministic parameters -------------------------

def init_params(key, vocab, d, ffn, n_blocks):
    ks = jax.random.split(key, 2 + n_blocks)

    def dense(k, shape, scale=0.02):
        # weights stored in bf16 (MXU-native), f32 accumulation inside kernels
        return (scale * jax.random.normal(k, shape, dtype=jnp.float32)).astype(jnp.bfloat16)

    params = {
        "emb": jax.random.normal(ks[0], (vocab, d), dtype=jnp.float32),
        "w_lm": dense(ks[1], (d, vocab)),
        "b_lm": jnp.zeros((1, vocab), jnp.float32),
        "blocks": [],
    }
    for i in range(n_blocks):
        bk = jax.random.split(ks[2 + i], 4)
        wqkv = dense(bk[0], (d, 3 * d))
        bqkv = jnp.zeros((1, 3 * d), jnp.float32)
        params["blocks"].append({
            "wqkv": wqkv, "bqkv": bqkv,
            # precomputed K/V slice (avoids a fresh [d,2d] HBM copy on every exit warm-up)
            "wkv": wqkv[:, d:], "bkv": bqkv[:, d:],
            "wo": dense(bk[1], (d, d)),   "bo": jnp.zeros((1, d), jnp.float32),
            "w1": dense(bk[2], (d, ffn)), "b1": jnp.zeros((1, ffn), jnp.float32),
            "w2": dense(bk[3], (ffn, d)), "b2": jnp.zeros((1, d), jnp.float32),
        })
    return params


# ------------------------------- CalmModel ----------------------------------

class CalmModelPallas:
    def __init__(self, params, n_blocks, max_seq_len, calm_lambda, calm_temp):
        self.params = params
        self.n_blocks = n_blocks
        self.max_seq_len = max_seq_len
        self.calm_lambda = calm_lambda
        self.calm_temp = calm_temp
        self.early_exit_decay = self.calc_early_exit_decay(calm_lambda, calm_temp)
        self.predicted_words = None
        self.predicted_words_prob = None
        self.kv_cache = [None] * n_blocks

    def calc_early_exit_decay(self, calm_lambda, calm_temp, max_length=None):
        if max_length is None:
            max_length = self.max_seq_len
        return [0.9 * calm_lambda + 0.1 * math.exp(-calm_temp * i / max_length)
                for i in range(self.n_blocks)]

    def _lm_head(self, h):
        bs, seq, d = h.shape
        V = self.params["w_lm"].shape[1]
        return lm_head_full(h.reshape(bs * seq, d),
                            self.params["w_lm"], self.params["b_lm"]).reshape(bs, seq, V)

    def _warm_kv(self, h, bp):
        return kv_projection(h, bp["wkv"], bp["bkv"])

    def forward(self, x, mask=None, index=None, rope=None,
                show_layer_probs=True, max_length=None):
        # TODO(synk): mask / index / rope are accepted for API parity; the unspecified inner
        # model's rope / external-mask handling is not defined in the reference, so the block
        # applies its own causal mask.
        bs, seq_len = x.shape
        if max_length is not None and max_length != len(self.early_exit_decay):
            self.early_exit_decay = self.calc_early_exit_decay(
                self.calm_lambda, self.calm_temp, max_length)
        blocks = self.params["blocks"]
        w_lm, b_lm = self.params["w_lm"], self.params["b_lm"]

        # activations travel in bf16 between layers; residual/softmax math stays f32 in-kernel
        h = jnp.take(self.params["emb"], x, axis=0).astype(jnp.bfloat16)   # [bs, seq, d]
        if show_layer_probs:
            pred_words = jnp.zeros((bs, self.n_blocks), dtype=jnp.float32)
            pred_word_probs = jnp.zeros((bs, self.n_blocks), dtype=jnp.float32)

        # one fused launch per layer (block + CALM check); layer i+1 is dispatched
        # before the single-scalar host sync of layer i so the D2H round-trip is hidden.
        nxt = fused_layer(h, blocks[0], w_lm, b_lm)

        for i in range(self.n_blocks):
            h, k_i, v_i, maxp, amax = nxt
            self.kv_cache[i] = (k_i, v_i)

            if i + 1 < self.n_blocks:
                nxt = fused_layer(h, blocks[i + 1], w_lm, b_lm)   # speculative dispatch

            if show_layer_probs:
                pred_words = pred_words.at[:, i].set(amax[:, 0].astype(jnp.float32))
                pred_word_probs = pred_word_probs.at[:, i].set(maxp[:, 0])

            prob_greater_than = self.early_exit_decay[i]
            # Single-scalar device->host read per layer (the reference's `if tensor > thr`
            # early-exit control flow requires a host decision; bs == 1 assumed, as in torch).
            if float(maxp[0, 0]) > prob_greater_than:
                print('early exit at block {} for index {}'.format(i, index))
                expected_out = self._lm_head(h)        # full-seq logits only on exit
                if i + 1 < self.n_blocks:
                    # the speculative block i+1 already produced K/V of h -> reuse as warm-up
                    self.kv_cache[i + 1] = (nxt[1], nxt[2])
                for jdx in range(i + 2, self.n_blocks):
                    self.kv_cache[jdx] = self._warm_kv(h, blocks[jdx])
                if show_layer_probs:
                    self.calm_tracking(pred_words, pred_word_probs)
                return expected_out

        if show_layer_probs:
            self.calm_tracking(pred_words, pred_word_probs)
        return self._lm_head(h)

    def calm_tracking(self, pred_word, pred_word_prob):
        if self.predicted_words is None:
            self.predicted_words = pred_word
            self.predicted_words_prob = pred_word_prob
        else:
            self.predicted_words = jnp.concatenate(
                (self.predicted_words, pred_word), axis=0)
            self.predicted_words_prob = jnp.concatenate(
                (self.predicted_words_prob, pred_word_prob), axis=0)


# --------------------------------- main --------------------------------------

if __name__ == "__main__":
    # lane-dense small shapes: hidden / ffn / vocab are multiples of 128
    bs, seq, d, ffn, vocab = 1, 8, 128, 512, 256
    n_blocks, max_seq_len = 4, 8
    calm_lambda, calm_temp = 0.9, 4.0

    key = jax.random.PRNGKey(0)
    params = init_params(key, vocab, d, ffn, n_blocks)
    model = CalmModelPallas(params, n_blocks, max_seq_len, calm_lambda, calm_temp)

    tok_key = jax.random.fold_in(key, 123)
    x = jax.random.randint(tok_key, (bs, seq), 0, vocab, dtype=jnp.int32)

    out = model.forward(x, show_layer_probs=True)
    out = jax.block_until_ready(out)
    assert out.shape == (bs, seq, vocab), out.shape
    assert model.predicted_words is not None
    assert model.predicted_words_prob.shape == (bs, n_blocks)
    print("KERNEL_OK")
</pallas_src>

<mosaic_0001>
module attributes {stable_mosaic.version = 11 : i64} {
  func.func @_fused_layer_kernel(%arg0: i32, %arg1: memref<1x8x128xbf16, #tpu.memory_space<vmem>>, %arg2: memref<128x384xbf16, #tpu.memory_space<vmem>>, %arg3: memref<1x384xf32, #tpu.memory_space<vmem>>, %arg4: memref<128x128xbf16, #tpu.memory_space<vmem>>, %arg5: memref<1x128xf32, #tpu.memory_space<vmem>>, %arg6: memref<128x512xbf16, #tpu.memory_space<vmem>>, %arg7: memref<1x512xf32, #tpu.memory_space<vmem>>, %arg8: memref<512x128xbf16, #tpu.memory_space<vmem>>, %arg9: memref<1x128xf32, #tpu.memory_space<vmem>>, %arg10: memref<128x256xbf16, #tpu.memory_space<vmem>>, %arg11: memref<1x256xf32, #tpu.memory_space<vmem>>, %arg12: memref<1x8x128xbf16, #tpu.memory_space<vmem>>, %arg13: memref<1x8x128xbf16, #tpu.memory_space<vmem>>, %arg14: memref<1x8x128xbf16, #tpu.memory_space<vmem>>, %arg15: memref<1x1xf32, #tpu.memory_space<vmem>>, %arg16: memref<1x1xi32, #tpu.memory_space<vmem>>, %arg17: memref<1x128xbf16, #tpu.memory_space<vmem>>, %arg18: memref<1x1xf32, #tpu.memory_space<vmem>>, %arg19: memref<1x1xf32, #tpu.memory_space<vmem>>, %arg20: memref<1x1xi32, #tpu.memory_space<vmem>>) attributes {dimension_semantics = [#tpu.dimension_semantics<arbitrary>], iteration_bounds = array<i64: 1>, scalar_prefetch = 0 : i64, scratch_operands = 4 : i64, tpu.core_type = #tpu.core_type<tc>, window_params = [{pipeline_mode = #tpu.pipeline_mode<synchronous>, transform_indices = @transform_0, window_bounds = array<i64: 1, 8, 128>}, {pipeline_mode = #tpu.pipeline_mode<synchronous>, transform_indices = @transform_1, window_bounds = array<i64: 128, 384>}, {pipeline_mode = #tpu.pipeline_mode<synchronous>, transform_indices = @transform_2, window_bounds = array<i64: 1, 384>}, {pipeline_mode = #tpu.pipeline_mode<synchronous>, transform_indices = @transform_3, window_bounds = array<i64: 128, 128>}, {pipeline_mode = #tpu.pipeline_mode<synchronous>, transform_indices = @transform_4, window_bounds = array<i64: 1, 128>}, {pipeline_mode = #tpu.pipeline_mode<synchronous>, transform_indices = @transform_5, window_bounds = array<i64: 128, 512>}, {pipeline_mode = #tpu.pipeline_mode<synchronous>, transform_indices = @transform_6, window_bounds = array<i64: 1, 512>}, {pipeline_mode = #tpu.pipeline_mode<synchronous>, transform_indices = @transform_7, window_bounds = array<i64: 512, 128>}, {pipeline_mode = #tpu.pipeline_mode<synchronous>, transform_indices = @transform_8, window_bounds = array<i64: 1, 128>}, {transform_indices = @transform_9, window_bounds = array<i64: 128, 256>}, {transform_indices = @transform_10, window_bounds = array<i64: 1, 256>}, {pipeline_mode = #tpu.pipeline_mode<synchronous>, transform_indices = @transform_11, window_bounds = array<i64: 1, 8, 128>}, {pipeline_mode = #tpu.pipeline_mode<synchronous>, transform_indices = @transform_12, window_bounds = array<i64: 1, 8, 128>}, {pipeline_mode = #tpu.pipeline_mode<synchronous>, transform_indices = @transform_13, window_bounds = array<i64: 1, 8, 128>}, {pipeline_mode = #tpu.pipeline_mode<synchronous>, transform_indices = @transform_14, window_bounds = array<i64: 1, 1>}, {pipeline_mode = #tpu.pipeline_mode<synchronous>, transform_indices = @transform_15, window_bounds = array<i64: 1, 1>}]} {
    %c0_i32 = arith.constant 0 : i32
    %0 = arith.cmpi eq, %arg0, %c0_i32 : i32
    %1 = arith.extui %0 : i1 to i32
    %c0_i32_0 = arith.constant 0 : i32
    %2 = arith.cmpi ne, %1, %c0_i32_0 : i32
    scf.if %2 {
      %c0_23 = arith.constant 0 : index
      %c0_24 = arith.constant 0 : index
      %c0_25 = arith.constant 0 : index
      %41 = vector.load %arg1[%c0_23, %c0_24, %c0_25] : memref<1x8x128xbf16, #tpu.memory_space<vmem>>, vector<1x8x128xbf16>
      %42 = vector.shape_cast %41 : vector<1x8x128xbf16> to vector<8x128xbf16>
      %c0_26 = arith.constant 0 : index
      %c0_27 = arith.constant 0 : index
      %43 = vector.load %arg2[%c0_26, %c0_27] : memref<128x384xbf16, #tpu.memory_space<vmem>>, vector<128x384xbf16>
      %cst_28 = arith.constant dense<0.000000e+00> : vector<8x384xf32>
      %44 = tpu.matmul %42, %43, %cst_28 {dimension_numbers = #tpu.dot_dimension_numbers<[1], [0], [0], [1], [0, 0, 1, 1], [], []>} : vector<8x128xbf16>, vector<128x384xbf16>, vector<8x384xf32> -> vector<8x384xf32>
      %c0_29 = arith.constant 0 : index
      %c0_30 = arith.constant 0 : index
      %45 = vector.load %arg3[%c0_29, %c0_30] : memref<1x384xf32, #tpu.memory_space<vmem>>, vector<1x384xf32>
      %46 = vector.broadcast %45 : vector<1x384xf32> to vector<8x384xf32>
      %47 = arith.addf %44, %46 : vector<8x384xf32>
      %48 = vector.extract_strided_slice %47 {offsets = [0, 0], sizes = [8, 128], strides = [1, 1]} : vector<8x384xf32> to vector<8x128xf32>
      %49 = vector.shape_cast %48 : vector<8x128xf32> to vector<1x8x128xf32>
      %50 = vector.extract_strided_slice %47 {offsets = [0, 128], sizes = [8, 128], strides = [1, 1]} : vector<8x384xf32> to vector<8x128xf32>
      %51 = vector.shape_cast %50 : vector<8x128xf32> to vector<1x8x128xf32>
      %52 = vector.extract_strided_slice %47 {offsets = [0, 256], sizes = [8, 128], strides = [1, 1]} : vector<8x384xf32> to vector<8x128xf32>
      %53 = vector.shape_cast %52 : vector<8x128xf32> to vector<1x8x128xf32>
      %54 = arith.truncf %49 : vector<1x8x128xf32> to vector<1x8x128xbf16>
      %55 = arith.truncf %51 : vector<1x8x128xf32> to vector<1x8x128xbf16>
      %56 = arith.truncf %53 : vector<1x8x128xf32> to vector<1x8x128xbf16>
      "tpu.trace_start"() <{level = 10 : i32, message = "bqd,bkd->bqk"}> : () -> ()
      %cst_31 = arith.constant dense<0.000000e+00> : vector<1x8x8xf32>
      %57 = tpu.matmul %54, %55, %cst_31 {dimension_numbers = #tpu.dot_dimension_numbers<[2], [2], [1], [1], [0, 0, 0, 1, 1, 1], [0], [0]>} : vector<1x8x128xbf16>, vector<1x8x128xbf16>, vector<1x8x8xf32> -> vector<1x8x8xf32>
      "tpu.trace_stop"() : () -> ()
      %cst_32 = arith.constant 0.0883883461 : f32
      %58 = vector.broadcast %cst_32 : f32 to vector<1x8x8xf32>
      %59 = arith.mulf %57, %58 : vector<1x8x8xf32>
      %60 = tpu.iota {dimensions = array<i32: 1>} : vector<1x8x8xi32>
      %61 = tpu.iota {dimensions = array<i32: 2>} : vector<1x8x8xi32>
      %62 = arith.cmpi sge, %60, %61 : vector<1x8x8xi32>
      %cst_33 = arith.constant -1.000000e+30 : f32
      %63 = vector.broadcast %cst_33 : f32 to vector<1x8x8xf32>
      %64 = arith.select %62, %59, %63 : vector<1x8x8xi1>, vector<1x8x8xf32>
      %cst_34 = arith.constant dense<0xFF800000> : vector<1x8xf32>
      %65 = vector.multi_reduction <maximumf>, %64, %cst_34 [2] : vector<1x8x8xf32> to vector<1x8xf32>
      %66 = vector.shape_cast %65 : vector<1x8xf32> to vector<1x8x1xf32>
      %67 = vector.broadcast %66 : vector<1x8x1xf32> to vector<1x8x8xf32>
      %68 = arith.subf %64, %67 : vector<1x8x8xf32>
      %69 = math.exp %68 : vector<1x8x8xf32>
      %cst_35 = arith.constant dense<0.000000e+00> : vector<1x8xf32>
      %70 = vector.multi_reduction <add>, %69, %cst_35 [2] : vector<1x8x8xf32> to vector<1x8xf32>
      %71 = vector.shape_cast %70 : vector<1x8xf32> to vector<1x8x1xf32>
      %72 = tpu.reciprocal %71 {approx = true} : vector<1x8x1xf32> -> vector<1x8x1xf32>
      %73 = vector.broadcast %72 : vector<1x8x1xf32> to vector<1x8x8xf32>
      %74 = arith.mulf %69, %73 : vector<1x8x8xf32>
      %75 = arith.truncf %74 : vector<1x8x8xf32> to vector<1x8x8xbf16>
      "tpu.trace_start"() <{level = 10 : i32, message = "bqk,bkd->bqd"}> : () -> ()
      %cst_36 = arith.constant dense<0.000000e+00> : vector<1x8x128xf32>
      %76 = tpu.matmul %75, %56, %cst_36 {dimension_numbers = #tpu.dot_dimension_numbers<[2], [1], [1], [2], [0, 0, 0, 1, 1, 2], [0], [0]>} : vector<1x8x8xbf16>, vector<1x8x128xbf16>, vector<1x8x128xf32> -> vector<1x8x128xf32>
      "tpu.trace_stop"() : () -> ()
      %77 = vector.shape_cast %76 : vector<1x8x128xf32> to vector<8x128xf32>
      %78 = arith.truncf %77 : vector<8x128xf32> to vector<8x128xbf16>
      %c0_37 = arith.constant 0 : index
      %c0_38 = arith.constant 0 : index
      %79 = vector.load %arg4[%c0_37, %c0_38] : memref<128x128xbf16, #tpu.memory_space<vmem>>, vector<128x128xbf16>
      %cst_39 = arith.constant dense<0.000000e+00> : vector<8x128xf32>
      %80 = tpu.matmul %78, %79, %cst_39 {dimension_numbers = #tpu.dot_dimension_numbers<[1], [0], [0], [1], [0, 0, 1, 1], [], []>} : vector<8x128xbf16>, vector<128x128xbf16>, vector<8x128xf32> -> vector<8x128xf32>
      %c0_40 = arith.constant 0 : index
      %c0_41 = arith.constant 0 : index
      %81 = vector.load %arg5[%c0_40, %c0_41] : memref<1x128xf32, #tpu.memory_space<vmem>>, vector<1x128xf32>
      %82 = vector.broadcast %81 : vector<1x128xf32> to vector<8x128xf32>
      %83 = arith.addf %80, %82 : vector<8x128xf32>
      %84 = arith.extf %42 : vector<8x128xbf16> to vector<8x128xf32>
      %85 = arith.addf %84, %83 : vector<8x128xf32>
      %86 = arith.truncf %85 : vector<8x128xf32> to vector<8x128xbf16>
      %c0_42 = arith.constant 0 : index
      %c0_43 = arith.constant 0 : index
      %87 = vector.load %arg6[%c0_42, %c0_43] : memref<128x512xbf16, #tpu.memory_space<vmem>>, vector<128x512xbf16>
      %cst_44 = arith.constant dense<0.000000e+00> : vector<8x512xf32>
      %88 = tpu.matmul %86, %87, %cst_44 {dimension_numbers = #tpu.dot_dimension_numbers<[1], [0], [0], [1], [0, 0, 1, 1], [], []>} : vector<8x128xbf16>, vector<128x512xbf16>, vector<8x512xf32> -> vector<8x512xf32>
      %c0_45 = arith.constant 0 : index
      %c0_46 = arith.constant 0 : index
      %89 = vector.load %arg7[%c0_45, %c0_46] : memref<1x512xf32, #tpu.memory_space<vmem>>, vector<1x512xf32>
      %90 = vector.broadcast %89 : vector<1x512xf32> to vector<8x512xf32>
      %91 = arith.addf %88, %90 : vector<8x512xf32>
      %92 = arith.mulf %91, %91 : vector<8x512xf32>
      %93 = arith.mulf %91, %92 : vector<8x512xf32>
      %cst_47 = arith.constant 4.471500e-02 : f32
      %94 = vector.broadcast %cst_47 : f32 to vector<8x512xf32>
      %95 = arith.mulf %94, %93 : vector<8x512xf32>
      %96 = arith.addf %91, %95 : vector<8x512xf32>
      %cst_48 = arith.constant 0.797884583 : f32
      %97 = vector.broadcast %cst_48 : f32 to vector<8x512xf32>
      %98 = arith.mulf %97, %96 : vector<8x512xf32>
      %99 = math.tanh %98 : vector<8x512xf32>
      %cst_49 = arith.constant 1.000000e+00 : f32
      %100 = vector.broadcast %cst_49 : f32 to vector<8x512xf32>
      %101 = arith.addf %100, %99 : vector<8x512xf32>
      %cst_50 = arith.constant 5.000000e-01 : f32
      %102 = vector.broadcast %cst_50 : f32 to vector<8x512xf32>
      %103 = arith.mulf %102, %101 : vector<8x512xf32>
      %104 = arith.mulf %91, %103 : vector<8x512xf32>
      %105 = arith.truncf %104 : vector<8x512xf32> to vector<8x512xbf16>
      %c0_51 = arith.constant 0 : index
      %c0_52 = arith.constant 0 : index
      %106 = vector.load %arg8[%c0_51, %c0_52] : memref<512x128xbf16, #tpu.memory_space<vmem>>, vector<512x128xbf16>
      %cst_53 = arith.constant dense<0.000000e+00> : vector<8x128xf32>
      %107 = tpu.matmul %105, %106, %cst_53 {dimension_numbers = #tpu.dot_dimension_numbers<[1], [0], [0], [1], [0, 0, 1, 1], [], []>} : vector<8x512xbf16>, vector<512x128xbf16>, vector<8x128xf32> -> vector<8x128xf32>
      %c0_54 = arith.constant 0 : index
      %c0_55 = arith.constant 0 : index
      %108 = vector.load %arg9[%c0_54, %c0_55] : memref<1x128xf32, #tpu.memory_space<vmem>>, vector<1x128xf32>
      %109 = vector.broadcast %108 : vector<1x128xf32> to vector<8x128xf32>
      %110 = arith.addf %107, %109 : vector<8x128xf32>
      %111 = arith.addf %85, %110 : vector<8x128xf32>
      %112 = vector.shape_cast %111 : vector<8x128xf32> to vector<1x8x128xf32>
      %113 = arith.truncf %112 : vector<1x8x128xf32> to vector<1x8x128xbf16>
      %c0_56 = arith.constant 0 : index
      %c0_57 = arith.constant 0 : index
      %c0_58 = arith.constant 0 : index
      %114 = vector.load %arg12[%c0_56, %c0_57, %c0_58] : memref<1x8x128xbf16, #tpu.memory_space<vmem>>, vector<1x8x128xbf16>
      tpu.vector_store %arg12[%c0_56, %c0_57, %c0_58], %113 {strides = array<i32>} : memref<1x8x128xbf16, #tpu.memory_space<vmem>>, vector<1x8x128xbf16>,
      %c0_59 = arith.constant 0 : index
      %c0_60 = arith.constant 0 : index
      %c0_61 = arith.constant 0 : index
      %115 = vector.load %arg13[%c0_59, %c0_60, %c0_61] : memref<1x8x128xbf16, #tpu.memory_space<vmem>>, vector<1x8x128xbf16>
      tpu.vector_store %arg13[%c0_59, %c0_60, %c0_61], %55 {strides = array<i32>} : memref<1x8x128xbf16, #tpu.memory_space<vmem>>, vector<1x8x128xbf16>,
      %c0_62 = arith.constant 0 : index
      %c0_63 = arith.constant 0 : index
      %c0_64 = arith.constant 0 : index
      %116 = vector.load %arg14[%c0_62, %c0_63, %c0_64] : memref<1x8x128xbf16, #tpu.memory_space<vmem>>, vector<1x8x128xbf16>
      tpu.vector_store %arg14[%c0_62, %c0_63, %c0_64], %56 {strides = array<i32>} : memref<1x8x128xbf16, #tpu.memory_space<vmem>>, vector<1x8x128xbf16>,
      %117 = vector.extract_strided_slice %112 {offsets = [0, 7, 0], sizes = [1, 1, 128], strides = [1, 1, 1]} : vector<1x8x128xf32> to vector<1x1x128xf32>
      %118 = vector.shape_cast %117 : vector<1x1x128xf32> to vector<1x128xf32>
      %119 = arith.truncf %118 : vector<1x128xf32> to vector<1x128xbf16>
      %c0_65 = arith.constant 0 : index
      %c0_66 = arith.constant 0 : index
      %120 = vector.load %arg17[%c0_65, %c0_66] : memref<1x128xbf16, #tpu.memory_space<vmem>>, vector<1x128xbf16>
      tpu.vector_store %arg17[%c0_65, %c0_66], %119 {strides = array<i32>} : memref<1x128xbf16, #tpu.memory_space<vmem>>, vector<1x128xbf16>,
      %cst_67 = arith.constant 0xFF800000 : f32
      %121 = vector.broadcast %cst_67 : f32 to vector<1x1xf32>
      %c0_68 = arith.constant 0 : index
      %c0_69 = arith.constant 0 : index
      %122 = vector.load %arg18[%c0_68, %c0_69] : memref<1x1xf32, #tpu.memory_space<vmem>>, vector<1x1xf32>
      tpu.vector_store %arg18[%c0_68, %c0_69], %121 {strides = array<i32>} : memref<1x1xf32, #tpu.memory_space<vmem>>, vector<1x1xf32>,
      %cst_70 = arith.constant 0.000000e+00 : f32
      %123 = vector.broadcast %cst_70 : f32 to vector<1x1xf32>
      %c0_71 = arith.constant 0 : index
      %c0_72 = arith.constant 0 : index
      %124 = vector.load %arg19[%c0_71, %c0_72] : memref<1x1xf32, #tpu.memory_space<vmem>>, vector<1x1xf32>
      tpu.vector_store %arg19[%c0_71, %c0_72], %123 {strides = array<i32>} : memref<1x1xf32, #tpu.memory_space<vmem>>, vector<1x1xf32>,
      %c0_i32_73 = arith.constant 0 : i32
      %125 = vector.broadcast %c0_i32_73 : i32 to vector<1x1xi32>
      %c0_74 = arith.constant 0 : index
      %c0_75 = arith.constant 0 : index
      %126 = vector.load %arg20[%c0_74, %c0_75] : memref<1x1xi32, #tpu.memory_space<vmem>>, vector<1x1xi32>
      tpu.vector_store %arg20[%c0_74, %c0_75], %125 {strides = array<i32>} : memref<1x1xi32, #tpu.memory_space<vmem>>, vector<1x1xi32>,
    } else {
    }
    %c0 = arith.constant 0 : index
    %c0_1 = arith.constant 0 : index
    %3 = vector.load %arg17[%c0, %c0_1] : memref<1x128xbf16, #tpu.memory_space<vmem>>, vector<1x128xbf16>
    %c0_2 = arith.constant 0 : index
    %c0_3 = arith.constant 0 : index
    %4 = vector.load %arg10[%c0_2, %c0_3] : memref<128x256xbf16, #tpu.memory_space<vmem>>, vector<128x256xbf16>
    %cst = arith.constant dense<0.000000e+00> : vector<1x256xf32>
    %5 = tpu.matmul %3, %4, %cst {dimension_numbers = #tpu.dot_dimension_numbers<[1], [0], [0], [1], [0, 0, 1, 1], [], []>} : vector<1x128xbf16>, vector<128x256xbf16>, vector<1x256xf32> -> vector<1x256xf32>
    %c0_4 = arith.constant 0 : index
    %c0_5 = arith.constant 0 : index
    %6 = vector.load %arg11[%c0_4, %c0_5] : memref<1x256xf32, #tpu.memory_space<vmem>>, vector<1x256xf32>
    %7 = arith.addf %5, %6 : vector<1x256xf32>
    %cst_6 = arith.constant dense<0xFF800000> : vector<1xf32>
    %8 = vector.multi_reduction <maximumf>, %7, %cst_6 [1] : vector<1x256xf32> to vector<1xf32>
    %9 = vector.shape_cast %8 : vector<1xf32> to vector<1x1xf32>
    %10 = tpu.iota {dimensions = array<i32: 1>} : vector<1x256xi32>
    %c256_i32 = arith.constant 256 : i32
    %11 = arith.muli %arg0, %c256_i32 : i32
    %12 = vector.broadcast %11 : i32 to vector<1x256xi32>
    %13 = arith.addi %10, %12 : vector<1x256xi32>
    %14 = vector.broadcast %9 : vector<1x1xf32> to vector<1x256xf32>
    %15 = arith.cmpf oeq, %7, %14 : vector<1x256xf32>
    %c2147483647_i32 = arith.constant 2147483647 : i32
    %16 = vector.broadcast %c2147483647_i32 : i32 to vector<1x256xi32>
    %17 = arith.select %15, %13, %16 : vector<1x256xi1>, vector<1x256xi32>
    %cst_7 = arith.constant dense<2147483647> : vector<1xi32>
    %18 = vector.multi_reduction <minsi>, %17, %cst_7 [1] : vector<1x256xi32> to vector<1xi32>
    %19 = vector.shape_cast %18 : vector<1xi32> to vector<1x1xi32>
    %c0_8 = arith.constant 0 : index
    %c0_9 = arith.constant 0 : index
    %20 = vector.load %arg18[%c0_8, %c0_9] : memref<1x1xf32, #tpu.memory_space<vmem>>, vector<1x1xf32>
    %21 = arith.maximumf %20, %9 : vector<1x1xf32>
    %c0_10 = arith.constant 0 : index
    %c0_11 = arith.constant 0 : index
    %22 = vector.load %arg19[%c0_10, %c0_11] : memref<1x1xf32, #tpu.memory_space<vmem>>, vector<1x1xf32>
    %23 = arith.subf %20, %21 : vector<1x1xf32>
    %24 = math.exp %23 : vector<1x1xf32>
    %25 = arith.mulf %22, %24 : vector<1x1xf32>
    %26 = vector.broadcast %21 : vector<1x1xf32> to vector<1x256xf32>
    %27 = arith.subf %7, %26 : vector<1x256xf32>
    %28 = math.exp %27 : vector<1x256xf32>
    %cst_12 = arith.constant dense<0.000000e+00> : vector<1xf32>
    %29 = vector.multi_reduction <add>, %28, %cst_12 [1] : vector<1x256xf32> to vector<1xf32>
    %30 = vector.shape_cast %29 : vector<1xf32> to vector<1x1xf32>
    %31 = arith.addf %25, %30 : vector<1x1xf32>
    %c0_13 = arith.constant 0 : index
    %c0_14 = arith.constant 0 : index
    %32 = vector.load %arg19[%c0_13, %c0_14] : memref<1x1xf32, #tpu.memory_space<vmem>>, vector<1x1xf32>
    tpu.vector_store %arg19[%c0_13, %c0_14], %31 {strides = array<i32>} : memref<1x1xf32, #tpu.memory_space<vmem>>, vector<1x1xf32>,
    %33 = arith.cmpf ogt, %9, %20 : vector<1x1xf32>
    %c0_15 = arith.constant 0 : index
    %c0_16 = arith.constant 0 : index
    %34 = vector.load %arg20[%c0_15, %c0_16] : memref<1x1xi32, #tpu.memory_space<vmem>>, vector<1x1xi32>
    %35 = arith.select %33, %19, %34 : vector<1x1xi1>, vector<1x1xi32>
    %c0_17 = arith.constant 0 : index
    %c0_18 = arith.constant 0 : index
    %36 = vector.load %arg20[%c0_17, %c0_18] : memref<1x1xi32, #tpu.memory_space<vmem>>, vector<1x1xi32>
    tpu.vector_store %arg20[%c0_17, %c0_18], %35 {strides = array<i32>} : memref<1x1xi32, #tpu.memory_space<vmem>>, vector<1x1xi32>,
    %c0_19 = arith.constant 0 : index
    %c0_20 = arith.constant 0 : index
    %37 = vector.load %arg18[%c0_19, %c0_20] : memref<1x1xf32, #tpu.memory_space<vmem>>, vector<1x1xf32>
    tpu.vector_store %arg18[%c0_19, %c0_20], %21 {strides = array<i32>} : memref<1x1xf32, #tpu.memory_space<vmem>>, vector<1x1xf32>,
    %c0_i32_21 = arith.constant 0 : i32
    %38 = arith.cmpi eq, %arg0, %c0_i32_21 : i32
    %39 = arith.extui %38 : i1 to i32
    %c0_i32_22 = arith.constant 0 : i32
    %40 = arith.cmpi ne, %39, %c0_i32_22 : i32
    scf.if %40 {
      %c0_23 = arith.constant 0 : index
      %c0_24 = arith.constant 0 : index
      %41 = vector.load %arg19[%c0_23, %c0_24] : memref<1x1xf32, #tpu.memory_space<vmem>>, vector<1x1xf32>
      %cst_25 = arith.constant 1.000000e+00 : f32
      %42 = vector.broadcast %cst_25 : f32 to vector<1x1xf32>
      %43 = arith.divf %42, %41 : vector<1x1xf32>
      %c0_26 = arith.constant 0 : index
      %c0_27 = arith.constant 0 : index
      %44 = vector.load %arg15[%c0_26, %c0_27] : memref<1x1xf32, #tpu.memory_space<vmem>>, vector<1x1xf32>
      tpu.vector_store %arg15[%c0_26, %c0_27], %43 {strides = array<i32>} : memref<1x1xf32, #tpu.memory_space<vmem>>, vector<1x1xf32>,
      %c0_28 = arith.constant 0 : index
      %c0_29 = arith.constant 0 : index
      %45 = vector.load %arg20[%c0_28, %c0_29] : memref<1x1xi32, #tpu.memory_space<vmem>>, vector<1x1xi32>
      %c0_30 = arith.constant 0 : index
      %c0_31 = arith.constant 0 : index
      %46 = vector.load %arg16[%c0_30, %c0_31] : memref<1x1xi32, #tpu.memory_space<vmem>>, vector<1x1xi32>
      tpu.vector_store %arg16[%c0_30, %c0_31], %45 {strides = array<i32>} : memref<1x1xi32, #tpu.memory_space<vmem>>, vector<1x1xi32>,
    } else {
    }
    return
  }
  func.func @transform_0(%arg0: i32) -> (i32, i32, i32) {
    %c0_i32 = arith.constant 0 : i32
    %c0_i32_0 = arith.constant 0 : i32
    %c0_i32_1 = arith.constant 0 : i32
    %c0_i32_2 = arith.constant 0 : i32
    return %c0_i32, %c0_i32_0, %c0_i32_1 : i32, i32, i32
  }
  func.func @transform_1(%arg0: i32) -> (i32, i32) {
    %c0_i32 = arith.constant 0 : i32
    %c0_i32_0 = arith.constant 0 : i32
    %c0_i32_1 = arith.constant 0 : i32
    return %c0_i32, %c0_i32_0 : i32, i32
  }
  func.func @transform_2(%arg0: i32) -> (i32, i32) {
    %c0_i32 = arith.constant 0 : i32
    %c0_i32_0 = arith.constant 0 : i32
    %c0_i32_1 = arith.constant 0 : i32
    return %c0_i32, %c0_i32_0 : i32, i32
  }
  func.func @transform_3(%arg0: i32) -> (i32, i32) {
    %c0_i32 = arith.constant 0 : i32
    %c0_i32_0 = arith.constant 0 : i32
    %c0_i32_1 = arith.constant 0 : i32
    return %c0_i32, %c0_i32_0 : i32, i32
  }
  func.func @transform_4(%arg0: i32) -> (i32, i32) {
    %c0_i32 = arith.constant 0 : i32
    %c0_i32_0 = arith.constant 0 : i32
    %c0_i32_1 = arith.constant 0 : i32
    return %c0_i32, %c0_i32_0 : i32, i32
  }
  func.func @transform_5(%arg0: i32) -> (i32, i32) {
    %c0_i32 = arith.constant 0 : i32
    %c0_i32_0 = arith.constant 0 : i32
    %c0_i32_1 = arith.constant 0 : i32
    return %c0_i32, %c0_i32_0 : i32, i32
  }
  func.func @transform_6(%arg0: i32) -> (i32, i32) {
    %c0_i32 = arith.constant 0 : i32
    %c0_i32_0 = arith.constant 0 : i32
    %c0_i32_1 = arith.constant 0 : i32
    return %c0_i32, %c0_i32_0 : i32, i32
  }
  func.func @transform_7(%arg0: i32) -> (i32, i32) {
    %c0_i32 = arith.constant 0 : i32
    %c0_i32_0 = arith.constant 0 : i32
    %c0_i32_1 = arith.constant 0 : i32
    return %c0_i32, %c0_i32_0 : i32, i32
  }
  func.func @transform_8(%arg0: i32) -> (i32, i32) {
    %c0_i32 = arith.constant 0 : i32
    %c0_i32_0 = arith.constant 0 : i32
    %c0_i32_1 = arith.constant 0 : i32
    return %c0_i32, %c0_i32_0 : i32, i32
  }
  func.func @transform_9(%arg0: i32) -> (i32, i32) {
    %c0_i32 = arith.constant 0 : i32
    %c0_i32_0 = arith.constant 0 : i32
    return %c0_i32, %arg0 : i32, i32
  }
  func.func @transform_10(%arg0: i32) -> (i32, i32) {
    %c0_i32 = arith.constant 0 : i32
    %c0_i32_0 = arith.constant 0 : i32
    return %c0_i32, %arg0 : i32, i32
  }
  func.func @transform_11(%arg0: i32) -> (i32, i32, i32) {
    %c0_i32 = arith.constant 0 : i32
    %c0_i32_0 = arith.constant 0 : i32
    %c0_i32_1 = arith.constant 0 : i32
    %c0_i32_2 = arith.constant 0 : i32
    return %c0_i32, %c0_i32_0, %c0_i32_1 : i32, i32, i32
  }
  func.func @transform_12(%arg0: i32) -> (i32, i32, i32) {
    %c0_i32 = arith.constant 0 : i32
    %c0_i32_0 = arith.constant 0 : i32
    %c0_i32_1 = arith.constant 0 : i32
    %c0_i32_2 = arith.constant 0 : i32
    return %c0_i32, %c0_i32_0, %c0_i32_1 : i32, i32, i32
  }
  func.func @transform_13(%arg0: i32) -> (i32, i32, i32) {
    %c0_i32 = arith.constant 0 : i32
    %c0_i32_0 = arith.constant 0 : i32
    %c0_i32_1 = arith.constant 0 : i32
    %c0_i32_2 = arith.constant 0 : i32
    return %c0_i32, %c0_i32_0, %c0_i32_1 : i32, i32, i32
  }
  func.func @transform_14(%arg0: i32) -> (i32, i32) {
    %c0_i32 = arith.constant 0 : i32
    %c0_i32_0 = arith.constant 0 : i32
    %c0_i32_1 = arith.constant 0 : i32
    return %c0_i32, %c0_i32_0 : i32, i32
  }
  func.func @transform_15(%arg0: i32) -> (i32, i32) {
    %c0_i32 = arith.constant 0 : i32
    %c0_i32_0 = arith.constant 0 : i32
    %c0_i32_1 = arith.constant 0 : i32
    return %c0_i32, %c0_i32_0 : i32, i32
  }
}

</mosaic_0001>

<llo_original>
// kernel: tpu_custom_call.1
$region0: #{tpu_custom_call.1}
  #allocation0 [shape = 'u32[]', space=smem, size = 0x4, offset = 0x4, fixed_abs, tag = 'smem constant byte address 0x4 - core index']
  #allocation1 [shape = 'u32[144,128]{1,0:T(1,128)}', space=vmem, size = 0x12000, scoped, tag = 'internal scratch']
  #allocation2 [shape = 'bf16[1,128]{1,0:T(2,128)(2,1)}', space=vmem, size = 0x200, scoped, tag = 'scratch operand']
  #allocation3 [shape = 'f32[1,1]{1,0:T(1,128)}', space=vmem, size = 0x200, scoped, tag = 'scratch operand']
  #allocation4 [shape = 'f32[1,1]{1,0:T(1,128)}', space=vmem, size = 0x200, scoped, tag = 'scratch operand']
  #allocation5 [shape = 's32[1,1]{1,0:T(1,128)}', space=vmem, size = 0x200, scoped, tag = 'scratch operand']
  %s0 = inlined_call_operand.hbm [shape: bf16[1,8,128], index: 0, kind: input, shape index: {}]
  %s1 = inlined_call_operand.hbm [shape: bf16[128,384], index: 1, kind: input, shape index: {}]
  %s2 = inlined_call_operand.hbm [shape: f32[1,384], index: 2, kind: input, shape index: {}]
  %s3 = inlined_call_operand.hbm [shape: bf16[128,128], index: 3, kind: input, shape index: {}]
  %s4 = inlined_call_operand.hbm [shape: f32[1,128], index: 4, kind: input, shape index: {}]
  %s5 = inlined_call_operand.hbm [shape: bf16[128,512], index: 5, kind: input, shape index: {}]
  %s6 = inlined_call_operand.hbm [shape: f32[1,512], index: 6, kind: input, shape index: {}]
  %s7 = inlined_call_operand.hbm [shape: bf16[512,128], index: 7, kind: input, shape index: {}]
  %s8 = inlined_call_operand.hbm [shape: f32[1,128], index: 8, kind: input, shape index: {}]
  %s9 = inlined_call_operand.hbm [shape: bf16[128,256], index: 9, kind: input, shape index: {}]
  %s10 = inlined_call_operand.hbm [shape: f32[1,256], index: 10, kind: input, shape index: {}]
  %s11 = inlined_call_operand.hbm [shape: bf16[1,8,128], index: 11, kind: output, shape index: {0}]
  %s12 = inlined_call_operand.hbm [shape: bf16[1,8,128], index: 12, kind: output, shape index: {1}]
  %s13 = inlined_call_operand.hbm [shape: bf16[1,8,128], index: 13, kind: output, shape index: {2}]
  %s14 = inlined_call_operand.hbm [shape: f32[1,1], index: 14, kind: output, shape index: {3}]
  %s15 = inlined_call_operand.hbm [shape: s32[1,1], index: 15, kind: output, shape index: {4}]
  %16 = xla_tuple %s11, %s12, %s13, %s14, %s15
  %s17 = sld [smem:[#allocation0]]
  $region138: #{tpu_custom_call.1} parent=0
    _
  %s19 = ssub.s32 1, %s17
  %s20 = scalar_select 0, %s19, %s17
  $region1: #{tpu_custom_call.1} parent=0
    #allocation6 [shape = 'u8[2048]{0}', space=vmem, size = 0x800, scoped, tag = 'input window, operand 0, single buffered']
    #allocation7 [shape = 's32[1]{0}', space=sflag, size = 0x4, scoped, tag = 'scoped memory for tpu_custom_call.1']
    #allocation8 [shape = 's32[1]{0}', space=sflag, size = 0x4, scoped, tag = 'scoped memory for tpu_custom_call.1']
    #allocation9 [shape = 'u8[98304]{0}', space=vmem, size = 0x18000, scoped, tag = 'input window, operand 1, single buffered']
    #allocation10 [shape = 's32[1]{0}', space=sflag, size = 0x4, scoped, tag = 'scoped memory for tpu_custom_call.1']
    #allocation11 [shape = 'u8[1536]{0}', space=vmem, size = 0x800, scoped, tag = 'input window, operand 2, single buffered']
    #allocation12 [shape = 'u8[32768]{0}', space=vmem, size = 0x8000, scoped, tag = 'input window, operand 3, single buffered']
    #allocation13 [shape = 's32[1]{0}', space=sflag, size = 0x4, scoped, tag = 'scoped memory for tpu_custom_call.1']
    #allocation14 [shape = 'u8[512]{0}', space=vmem, size = 0x400, scoped, tag = 'input window, operand 4, single buffered']
    #allocation15 [shape = 'u8[131072]{0}', space=vmem, size = 0x20000, scoped, tag = 'input window, operand 5, single buffered']
    #allocation16 [shape = 's32[1]{0}', space=sflag, size = 0x4, scoped, tag = 'scoped memory for tpu_custom_call.1']
    #allocation17 [shape = 'u8[2048]{0}', space=vmem, size = 0x800, scoped, tag = 'input window, operand 6, single buffered']
    #allocation18 [shape = 'u8[131072]{0}', space=vmem, size = 0x20000, scoped, tag = 'input window, operand 7, single buffered']
    #allocation19 [shape = 's32[1]{0}', space=sflag, size = 0x4, scoped, tag = 'scoped memory for tpu_custom_call.1']
    #allocation20 [shape = 'u8[512]{0}', space=vmem, size = 0x400, scoped, tag = 'input window, operand 8, single buffered']
    #allocation21 [shape = 'u8[65536]{0}', space=vmem, size = 0x10000, scoped, tag = 'input window, operand 9, single buffered']
    #allocation22 [shape = 's32[1]{0}', space=sflag, size = 0x4, scoped, tag = 'scoped memory for tpu_custom_call.1']
    #allocation23 [shape = 'u8[1024]{0}', space=vmem, size = 0x400, scoped, tag = 'input window, operand 10, single buffered']
    #allocation24 [shape = 'u8[2048]{0}', space=vmem, size = 0x800, scoped, tag = 'output window, operand 0, single buffered']
    #allocation25 [shape = 'u8[2048]{0}', space=vmem, size = 0x800, scoped, tag = 'output window, operand 1, single buffered']
    #allocation26 [shape = 's32[1]{0}', space=sflag, size = 0x4, scoped, tag = 'scoped memory for tpu_custom_call.1']
    #allocation27 [shape = 'u8[2048]{0}', space=vmem, size = 0x800, scoped, tag = 'output window, operand 2, single buffered']
    #allocation28 [shape = 'u8[512]{0}', space=vmem, size = 0x400, scoped, tag = 'output window, operand 3, single buffered']
    #allocation29 [shape = 's32[1]{0}', space=sflag, size = 0x4, scoped, tag = 'scoped memory for tpu_custom_call.1']
    #allocation30 [shape = 'u8[512]{0}', space=vmem, size = 0x400, scoped, tag = 'output window, operand 4, single buffered']
    %21 = vsyncpa [#allocation7], 0
    %22 = vsyncpa [#allocation10], 0
    %23 = vsyncpa [#allocation13], 0
    %24 = vsyncpa [#allocation16], 0
    %25 = vsyncpa [#allocation19], 0
    %26 = vsyncpa [#allocation22], 0
    %27 = vsyncpa [#allocation8], 0
    %28 = vsyncpa [#allocation26], 0
    %29 = vsyncpa [#allocation29], 0
    // Predicated region
    $region2: #{tpu_custom_call.1} parent=1 // pred_check
      _
    $region3: #{tpu_custom_call.1} parent=1 // pred_check_branch
      %31 = sbr.rel (0) target = $region5
    $region4: #{tpu_custom_call.1} parent=1 // pred_region
      %s33 = ssub.s32 64, 64
      %34 = vsyncadd [#allocation7], %s33
      %s36 = sshll.u32 [#allocation6], 4
      %s37 = int_to_ptr.vmem [resolvable:$true] %s36
      %39 = dma.hbm_to_vmem [thread:$0]  %s0, 64, %s37, [#allocation7]
    $region5: #{tpu_custom_call.1} parent=1 // pred_fallthru
      _
    // Predicated region
    $region6: #{tpu_custom_call.1} parent=1 // pred_check
      _
    $region7: #{tpu_custom_call.1} parent=1 // pred_check_branch
      %41 = sbr.rel (0) target = $region9
    $region8: #{tpu_custom_call.1} parent=1 // pred_region
      %s43 = ssub.s32 3072, 3072
      %44 = vsyncadd [#allocation10], %s43
      %s45 = sshll.u32 [#allocation9], 4
      %s46 = int_to_ptr.vmem [resolvable:$true] %s45
      %51 = dma.hbm_to_vmem [thread:$0]  %s1, 3072, %s46, [#allocation10], 192, 192, 12
    $region9: #{tpu_custom_call.1} parent=1 // pred_fallthru
      _
    // Predicated region
    $region10: #{tpu_custom_call.1} parent=1 // pred_check
      _
    $region11: #{tpu_custom_call.1} parent=1 // pred_check_branch
      %53 = sbr.rel (0) target = $region13
    $region12: #{tpu_custom_call.1} parent=1 // pred_region
      %s55 = ssub.s32 48, 48
      %56 = vsyncadd [#allocation10], %s55
      %s58 = sshll.u32 [#allocation11], 4
      %s59 = int_to_ptr.vmem [resolvable:$true] %s58
      %61 = dma.hbm_to_vmem [thread:$0]  %s2, 48, %s59, [#allocation10]
    $region13: #{tpu_custom_call.1} parent=1 // pred_fallthru
      _
    // Predicated region
    $region14: #{tpu_custom_call.1} parent=1 // pred_check
      _
    $region15: #{tpu_custom_call.1} parent=1 // pred_check_branch
      %63 = sbr.rel (0) target = $region17
    $region16: #{tpu_custom_call.1} parent=1 // pred_region
      %s65 = ssub.s32 1024, 1024
      %66 = vsyncadd [#allocation13], %s65
      %s67 = sshll.u32 [#allocation12], 4
      %s68 = int_to_ptr.vmem [resolvable:$true] %s67
      %73 = dma.hbm_to_vmem [thread:$0]  %s3, 1024, %s68, [#allocation13], 64, 64, 4
    $region17: #{tpu_custom_call.1} parent=1 // pred_fallthru
      _
    // Predicated region
    $region18: #{tpu_custom_call.1} parent=1 // pred_check
      _
    $region19: #{tpu_custom_call.1} parent=1 // pred_check_branch
      %75 = sbr.rel (0) target = $region21
    $region20: #{tpu_custom_call.1} parent=1 // pred_region
      %s77 = ssub.s32 16, 16
      %78 = vsyncadd [#allocation13], %s77
      %s80 = sshll.u32 [#allocation14], 4
      %s81 = int_to_ptr.vmem [resolvable:$true] %s80
      %83 = dma.hbm_to_vmem [thread:$0]  %s4, 16, %s81, [#allocation13]
    $region21: #{tpu_custom_call.1} parent=1 // pred_fallthru
      _
    // Predicated region
    $region22: #{tpu_custom_call.1} parent=1 // pred_check
      _
    $region23: #{tpu_custom_call.1} parent=1 // pred_check_branch
      %85 = sbr.rel (0) target = $region25
    $region24: #{tpu_custom_call.1} parent=1 // pred_region
      %s87 = ssub.s32 4096, 4096
      %88 = vsyncadd [#allocation16], %s87
      %s89 = sshll.u32 [#allocation15], 4
      %s90 = int_to_ptr.vmem [resolvable:$true] %s89
      %95 = dma.hbm_to_vmem [thread:$0]  %s5, 4096, %s90, [#allocation16], 256, 256, 16
    $region25: #{tpu_custom_call.1} parent=1 // pred_fallthru
      _
    // Predicated region
    $region26: #{tpu_custom_call.1} parent=1 // pred_check
      _
    $region27: #{tpu_custom_call.1} parent=1 // pred_check_branch
      %97 = sbr.rel (0) target = $region29
    $region28: #{tpu_custom_call.1} parent=1 // pred_region
      %s99 = ssub.s32 64, 64
      %100 = vsyncadd [#allocation16], %s99
      %s102 = sshll.u32 [#allocation17], 4
      %s103 = int_to_ptr.vmem [resolvable:$true] %s102
      %105 = dma.hbm_to_vmem [thread:$0]  %s6, 64, %s103, [#allocation16]
    $region29: #{tpu_custom_call.1} parent=1 // pred_fallthru
      _
    // Predicated region
    $region30: #{tpu_custom_call.1} parent=1 // pred_check
      _
    $region31: #{tpu_custom_call.1} parent=1 // pred_check_branch
      %107 = sbr.rel (0) target = $region33
    $region32: #{tpu_custom_call.1} parent=1 // pred_region
      %s109 = ssub.s32 4096, 4096
      %110 = vsyncadd [#allocation19], %s109
      %s111 = sshll.u32 [#allocation18], 4
      %s112 = int_to_ptr.vmem [resolvable:$true] %s111
      %117 = dma.hbm_to_vmem [thread:$0]  %s7, 4096, %s112, [#allocation19], 64, 64, 4
    $region33: #{tpu_custom_call.1} parent=1 // pred_fallthru
      _
    // Predicated region
    $region34: #{tpu_custom_call.1} parent=1 // pred_check
      _
    $region35: #{tpu_custom_call.1} parent=1 // pred_check_branch
      %119 = sbr.rel (0) target = $region37
    $region36: #{tpu_custom_call.1} parent=1 // pred_region
      %s121 = ssub.s32 16, 16
      %122 = vsyncadd [#allocation19], %s121
      %s124 = sshll.u32 [#allocation20], 4
      %s125 = int_to_ptr.vmem [resolvable:$true] %s124
      %127 = dma.hbm_to_vmem [thread:$0]  %s8, 16, %s125, [#allocation19]
    $region37: #{tpu_custom_call.1} parent=1 // pred_fallthru
      _
    // Predicated region
    $region38: #{tpu_custom_call.1} parent=1 // pred_check
      _
    $region39: #{tpu_custom_call.1} parent=1 // pred_check_branch
      %129 = sbr.rel (0) target = $region41
    $region40: #{tpu_custom_call.1} parent=1 // pred_region
      %s131 = ssub.s32 2048, 2048
      %132 = vsyncadd [#allocation22], %s131
      %s133 = sshll.u32 [#allocation21], 4
      %s134 = int_to_ptr.vmem [resolvable:$true] %s133
      %139 = dma.hbm_to_vmem [thread:$0]  %s9, 2048, %s134, [#allocation22], 128, 128, 8
    $region41: #{tpu_custom_call.1} parent=1 // pred_fallthru
      _
    // Predicated region
    $region42: #{tpu_custom_call.1} parent=1 // pred_check
      _
    $region43: #{tpu_custom_call.1} parent=1 // pred_check_branch
      %141 = sbr.rel (0) target = $region45
    $region44: #{tpu_custom_call.1} parent=1 // pred_region
      %s143 = ssub.s32 32, 32
      %144 = vsyncadd [#allocation22], %s143
      %s146 = sshll.u32 [#allocation23], 4
      %s147 = int_to_ptr.vmem [resolvable:$true] %s146
      %149 = dma.hbm_to_vmem [thread:$0]  %s10, 32, %s147, [#allocation22]
    $region45: #{tpu_custom_call.1} parent=1 // pred_fallthru
      _
    // Predicated region
    $region46: #{tpu_custom_call.1} parent=1 // pred_check
      _
    $region47: #{tpu_custom_call.1} parent=1 // pred_check_branch
      %151 = sbr.rel (0) target = $region49
    $region48: #{tpu_custom_call.1} parent=1 // pred_region
      %152 = dma.done [#allocation7], 64
    $region49: #{tpu_custom_call.1} parent=1 // pred_fallthru
      _
    // Predicated region
    $region50: #{tpu_custom_call.1} parent=1 // pred_check
      _
    $region51: #{tpu_custom_call.1} parent=1 // pred_check_branch
      %154 = sbr.rel (0) target = $region53
    $region52: #{tpu_custom_call.1} parent=1 // pred_region
      %155 = dma.done [#allocation10], 3072
    $region53: #{tpu_custom_call.1} parent=1 // pred_fallthru
      _
    // Predicated region
    $region54: #{tpu_custom_call.1} parent=1 // pred_check
      _
    $region55: #{tpu_custom_call.1} parent=1 // pred_check_branch
      %157 = sbr.rel (0) target = $region57
    $region56: #{tpu_custom_call.1} parent=1 // pred_region
      %158 = dma.done [#allocation10], 48
    $region57: #{tpu_custom_call.1} parent=1 // pred_fallthru
      _
    // Predicated region
    $region58: #{tpu_custom_call.1} parent=1 // pred_check
      _
    $region59: #{tpu_custom_call.1} parent=1 // pred_check_branch
      %160 = sbr.rel (0) target = $region61
    $region60: #{tpu_custom_call.1} parent=1 // pred_region
      %161 = dma.done [#allocation13], 1024
    $region61: #{tpu_custom_call.1} parent=1 // pred_fallthru
      _
    // Predicated region
    $region62: #{tpu_custom_call.1} parent=1 // pred_check
      _
    $region63: #{tpu_custom_call.1} parent=1 // pred_check_branch
      %163 = sbr.rel (0) target = $region65
    $region64: #{tpu_custom_call.1} parent=1 // pred_region
      %164 = dma.done [#allocation13], 16
    $region65: #{tpu_custom_call.1} parent=1 // pred_fallthru
      _
    // Predicated region
    $region66: #{tpu_custom_call.1} parent=1 // pred_check
      _
    $region67: #{tpu_custom_call.1} parent=1 // pred_check_branch
      %166 = sbr.rel (0) target = $region69
    $region68: #{tpu_custom_call.1} parent=1 // pred_region
      %167 = dma.done [#allocation16], 4096
    $region69: #{tpu_custom_call.1} parent=1 // pred_fallthru
      _
    // Predicated region
    $region70: #{tpu_custom_call.1} parent=1 // pred_check
      _
    $region71: #{tpu_custom_call.1} parent=1 // pred_check_branch
      %169 = sbr.rel (0) target = $region73
    $region72: #{tpu_custom_call.1} parent=1 // pred_region
      %170 = dma.done [#allocation16], 64
    $region73: #{tpu_custom_call.1} parent=1 // pred_fallthru
      _
    // Predicated region
    $region74: #{tpu_custom_call.1} parent=1 // pred_check
      _
    $region75: #{tpu_custom_call.1} parent=1 // pred_check_branch
      %172 = sbr.rel (0) target = $region77
    $region76: #{tpu_custom_call.1} parent=1 // pred_region
      %173 = dma.done [#allocation19], 4096
    $region77: #{tpu_custom_call.1} parent=1 // pred_fallthru
      _
    // Predicated region
    $region78: #{tpu_custom_call.1} parent=1 // pred_check
      _
    $region79: #{tpu_custom_call.1} parent=1 // pred_check_branch
      %175 = sbr.rel (0) target = $region81
    $region80: #{tpu_custom_call.1} parent=1 // pred_region
      %176 = dma.done [#allocation19], 16
    $region81: #{tpu_custom_call.1} parent=1 // pred_fallthru
      _
    // Predicated region
    $region82: #{tpu_custom_call.1} parent=1 // pred_check
      _
    $region83: #{tpu_custom_call.1} parent=1 // pred_check_branch
      %178 = sbr.rel (0) target = $region85
    $region84: #{tpu_custom_call.1} parent=1 // pred_region
      %179 = dma.done [#allocation22], 2048
    $region85: #{tpu_custom_call.1} parent=1 // pred_fallthru
      _
    // Predicated region
    $region86: #{tpu_custom_call.1} parent=1 // pred_check
      _
    $region87: #{tpu_custom_call.1} parent=1 // pred_check_branch
      %181 = sbr.rel (0) target = $region89
    $region88: #{tpu_custom_call.1} parent=1 // pred_region
      %182 = dma.done [#allocation22], 32
    $region89: #{tpu_custom_call.1} parent=1 // pred_fallthru
      _
    %p184 = scmp.eq.s32.totalorder 0, 0
    // Predicated region
    $region90: #{tpu_custom_call.1} parent=1 // pred_check
      %p185 = pneg %p184
    $region91: #{tpu_custom_call.1} parent=1 // pred_check_branch
      %187 = sbr.rel (%p185) target = $region93
    $region92: #{tpu_custom_call.1} parent=1 // pred_region
      %v188 = vld [vmem:[#allocation6] sm:$0xf]
      %v189 = vld [vmem:[#allocation9] sm:$0xff]
      %v190 = vld [vmem:[#allocation9 + $0x8] sm:$0xf]
      %v191 = vld [vmem:[#allocation9 + $0xc] sm:$0xff]
      %v192 = vld [vmem:[#allocation9 + $0x14] sm:$0xf]
      %v193 = vld [vmem:[#allocation9 + $0x18] sm:$0xff]
      %v194 = vld [vmem:[#allocation9 + $0x20] sm:$0xf]
      %v195 = vld [vmem:[#allocation9 + $0x24] sm:$0xff]
      %v196 = vld [vmem:[#allocation9 + $0x2c] sm:$0xf]
      %v197 = vld [vmem:[#allocation9 + $0x30] sm:$0xff]
      %v198 = vld [vmem:[#allocation9 + $0x38] sm:$0xf]
      %v199 = vld [vmem:[#allocation9 + $0x3c] sm:$0xff]
      %v200 = vld [vmem:[#allocation9 + $0x44] sm:$0xf]
      %v201 = vld [vmem:[#allocation9 + $0x48] sm:$0xff]
      %v202 = vld [vmem:[#allocation9 + $0x50] sm:$0xf]
      %v203 = vld [vmem:[#allocation9 + $0x54] sm:$0xff]
      %v204 = vld [vmem:[#allocation9 + $0x5c] sm:$0xf]
      %v205 = vld [vmem:[#allocation9 + $0x60] sm:$0xff]
      %v206 = vld [vmem:[#allocation9 + $0x68] sm:$0xf]
      %v207 = vld [vmem:[#allocation9 + $0x6c] sm:$0xff]
      %v208 = vld [vmem:[#allocation9 + $0x74] sm:$0xf]
      %v209 = vld [vmem:[#allocation9 + $0x78] sm:$0xff]
      %v210 = vld [vmem:[#allocation9 + $0x80] sm:$0xf]
      %v211 = vld [vmem:[#allocation9 + $0x84] sm:$0xff]
      %v212 = vld [vmem:[#allocation9 + $0x8c] sm:$0xf]
      %v213 = vld [vmem:[#allocation9 + $0x90] sm:$0xff]
      %v214 = vld [vmem:[#allocation9 + $0x98] sm:$0xf]
      %v215 = vld [vmem:[#allocation9 + $0x9c] sm:$0xff]
      %v216 = vld [vmem:[#allocation9 + $0xa4] sm:$0xf]
      %v217 = vld [vmem:[#allocation9 + $0xa8] sm:$0xff]
      %v218 = vld [vmem:[#allocation9 + $0xb0] sm:$0xf]
      %v219 = vld [vmem:[#allocation9 + $0xb4] sm:$0xff]
      %v220 = vld [vmem:[#allocation9 + $0xbc] sm:$0xf]
      %v221 = vld [vmem:[#allocation11] sm:$0x7]
      %v223 = vlaneseq
      %v224 = vshrl.u32 %v223, 7
      %v225 = vsub.s32 0, %v224
      %v226 = vrot.slane %v221, %v225
      %v227 = vlaneseq
      %v228 = vshrl.u32 %v227, 7
      %v229 = vsub.s32 1, %v228
      %v230 = vrot.slane %v221, %v229
      %v231 = vlaneseq
      %v232 = vshrl.u32 %v231, 7
      %v233 = vsub.s32 2, %v232
      %v234 = vrot.slane %v221, %v233
      %v270 = vunpack.c.l.b16 %v189
      %v271 = vunpack.c.h.b16 %v189
      %v272 = vunpack.c.l.b16 %v190
      %v273 = vunpack.c.l.b16 %v191
      %v274 = vunpack.c.h.b16 %v191
      %v275 = vunpack.c.l.b16 %v192
      %v276 = vunpack.c.l.b16 %v193
      %v277 = vunpack.c.h.b16 %v193
      %v278 = vunpack.c.l.b16 %v194
      %v279 = vunpack.c.l.b16 %v195
      %v280 = vunpack.c.h.b16 %v195
      %v281 = vunpack.c.l.b16 %v196
      %v282 = vunpack.c.l.b16 %v197
      %v283 = vunpack.c.h.b16 %v197
      %v284 = vunpack.c.l.b16 %v198
      %v285 = vunpack.c.l.b16 %v199
      %v286 = vunpack.c.h.b16 %v199
      %v287 = vunpack.c.l.b16 %v200
      %v288 = vunpack.c.l.b16 %v201
      %v289 = vunpack.c.h.b16 %v201
      %v290 = vunpack.c.l.b16 %v202
      %v291 = vunpack.c.l.b16 %v203
      %v292 = vunpack.c.h.b16 %v203
      %v293 = vunpack.c.l.b16 %v204
      %v294 = vunpack.c.l.b16 %v205
      %v295 = vunpack.c.h.b16 %v205
      %v296 = vunpack.c.l.b16 %v206
      %v297 = vunpack.c.l.b16 %v207
      %v298 = vunpack.c.h.b16 %v207
      %v299 = vunpack.c.l.b16 %v208
      %v300 = vunpack.c.l.b16 %v209
      %v301 = vunpack.c.h.b16 %v209
      %v302 = vunpack.c.l.b16 %v210
      %v303 = vunpack.c.l.b16 %v211
      %v304 = vunpack.c.h.b16 %v211
      %v305 = vunpack.c.l.b16 %v212
      %v306 = vunpack.c.l.b16 %v213
      %v307 = vunpack.c.h.b16 %v213
      %v308 = vunpack.c.l.b16 %v214
      %v309 = vunpack.c.l.b16 %v215
      %v310 = vunpack.c.h.b16 %v215
      %v311 = vunpack.c.l.b16 %v216
      %v312 = vunpack.c.l.b16 %v217
      %v313 = vunpack.c.h.b16 %v217
      %v314 = vunpack.c.l.b16 %v218
      %v315 = vunpack.c.l.b16 %v219
      %v316 = vunpack.c.h.b16 %v219
      %v317 = vunpack.c.l.b16 %v220
      %v318 = vpack.c.b16 %v273, %v270
      %v319 = vpack.c.b16 %v274, %v271
      %v320 = vpack.c.b16 %v275, %v272
      %v321 = vpack.c.b16 %v279, %v276
      %v322 = vpack.c.b16 %v280, %v277
      %v323 = vpack.c.b16 %v281, %v278
      %v324 = vpack.c.b16 %v285, %v282
      %v325 = vpack.c.b16 %v286, %v283
      %v326 = vpack.c.b16 %v287, %v284
      %v327 = vpack.c.b16 %v291, %v288
      %v328 = vpack.c.b16 %v292, %v289
      %v329 = vpack.c.b16 %v293, %v290
      %v330 = vpack.c.b16 %v297, %v294
      %v331 = vpack.c.b16 %v298, %v295
      %v332 = vpack.c.b16 %v299, %v296
      %v333 = vpack.c.b16 %v303, %v300
      %v334 = vpack.c.b16 %v304, %v301
      %v335 = vpack.c.b16 %v305, %v302
      %v336 = vpack.c.b16 %v309, %v306
      %v337 = vpack.c.b16 %v310, %v307
      %v338 = vpack.c.b16 %v311, %v308
      %v339 = vpack.c.b16 %v315, %v312
      %v340 = vpack.c.b16 %v316, %v313
      %v341 = vpack.c.b16 %v317, %v314
      %366 = vmatprep.subr.bf16.mxu0 %v319
      %367 = vmatpush1.bf16.msra.mxu0 %v318
      %368 = vmatprep.subr.bf16.mxu0 %v322
      %369 = vmatpush1.bf16.msra.mxu0 %v321
      %370 = vmatprep.subr.bf16.mxu0 %v325
      %371 = vmatpush1.bf16.msra.mxu0 %v324
      %372 = vmatprep.subr.bf16.mxu0 %v328
      %373 = vmatpush1.bf16.msra.mxu0 %v327
      %374 = vmatprep.subr.bf16.mxu0 %v331
      %375 = vmatpush1.bf16.msra.mxu0 %v330
      %376 = vmatprep.subr.bf16.mxu0 %v334
      %377 = vmatpush1.bf16.msra.mxu0 %v333
      %378 = vmatprep.subr.bf16.mxu0 %v337
      %379 = vmatpush1.bf16.msra.mxu0 %v336
      %380 = vmatprep.subr.bf16.mxu0 %v340
      %381 = vmatpush1.bf16.msra.mxu0 %v339
      %382 = vmatprep.subr.bf16.mxu0 0
      %383 = vmatpush1.bf16.msra.mxu0 0
      %384 = vmatprep.subr.bf16.mxu0 0
      %385 = vmatpush1.bf16.msra.mxu0 0
      %386 = vmatprep.subr.bf16.mxu0 0
      %387 = vmatpush1.bf16.msra.mxu0 0
      %388 = vmatprep.subr.bf16.mxu0 0
      %389 = vmatpush1.bf16.msra.mxu0 0
      %390 = vmatprep.subr.bf16.mxu0 0
      %391 = vmatpush1.bf16.msra.mxu0 0
      %392 = vmatprep.subr.bf16.mxu0 0
      %393 = vmatpush1.bf16.msra.mxu0 0
      %394 = vmatprep.subr.bf16.mxu0 0
      %395 = vmatpush1.bf16.msra.mxu0 0
      %396 = vmatprep.subr.bf16.mxu0 0
      %397 = vmatpush1.bf16.msra.mxu0 0
      %398 = vmatprep.mubr.bf16.mxu0 0
      %399 = vmatmul.mubr.bf16.gmra.mrb[0].mxu0 %v188
      %v400 = vpop.f32.mrb[0].mxu0
      %v401 = vadd.f32 %v226, %v400
      %v402 = vpop.f32.mrb[0].mxu0
      %v403 = vadd.f32 %v230, %v402
      %v404 = vpop.f32.mrb[0].mxu0
      %v405 = vpop.f32.mrb[0].mxu0
      %406 = vdwg.mxu0
      %407 = vmatprep.subr.bf16.mxu0 0
      %408 = vmatpush1.bf16.msra.mxu0 %v320
      %409 = vmatprep.subr.bf16.mxu0 0
      %410 = vmatpush1.bf16.msra.mxu0 %v323
      %411 = vmatprep.subr.bf16.mxu0 0
      %412 = vmatpush1.bf16.msra.mxu0 %v326
      %413 = vmatprep.subr.bf16.mxu0 0
      %414 = vmatpush1.bf16.msra.mxu0 %v329
      %415 = vmatprep.subr.bf16.mxu0 0
      %416 = vmatpush1.bf16.msra.mxu0 %v332
      %417 = vmatprep.subr.bf16.mxu0 0
      %418 = vmatpush1.bf16.msra.mxu0 %v335
      %419 = vmatprep.subr.bf16.mxu0 0
      %420 = vmatpush1.bf16.msra.mxu0 %v338
      %421 = vmatprep.subr.bf16.mxu0 0
      %422 = vmatpush1.bf16.msra.mxu0 %v341
      %423 = vmatprep.subr.bf16.mxu0 0
      %424 = vmatpush1.bf16.msra.mxu0 0
      %425 = vmatprep.subr.bf16.mxu0 0
      %426 = vmatpush1.bf16.msra.mxu0 0
      %427 = vmatprep.subr.bf16.mxu0 0
      %428 = vmatpush1.bf16.msra.mxu0 0
      %429 = vmatprep.subr.bf16.mxu0 0
      %430 = vmatpush1.bf16.msra.mxu0 0
      %431 = vmatprep.subr.bf16.mxu0 0
      %432 = vmatpush1.bf16.msra.mxu0 0
      %433 = vmatprep.subr.bf16.mxu0 0
      %434 = vmatpush1.bf16.msra.mxu0 0
      %435 = vmatprep.subr.bf16.mxu0 0
      %436 = vmatpush1.bf16.msra.mxu0 0
      %437 = vmatprep.subr.bf16.mxu0 0
      %438 = vmatpush1.bf16.msra.mxu0 0
      %439 = vmatprep.mubr.bf16.mxu0 0
      %440 = vmatmul.mubr.bf16.gmra.mrb[0].mxu0 %v188
      %v441 = vpop.f32.mrb[0].mxu0
      %v442 = vadd.f32 %v234, %v441
      %v443 = vpop.f32.mrb[0].mxu0
      %v444 = vpop.f32.mrb[0].mxu0
      %v445 = vpop.f32.mrb[0].mxu0
      %446 = vdwg.mxu0
      %v447 = vpack.c.bf16 %v401, %v401
      %v448 = vpack.c.bf16 %v403, %v403
      %v449 = vpack.c.bf16 %v442, %v442
      %450 = vmatprep.subr.bf16.mxu0 0
      %451 = vmatpush1.bf16.xpose.msra.mxu0 %v448
      %452 = vmatprep.subr.bf16.mxu0 0
      %453 = vmatpush1.bf16.xpose.msra.mxu0 0
      %454 = vmatprep.subr.bf16.mxu0 0
      %455 = vmatpush1.bf16.xpose.msra.mxu0 0
      %456 = vmatprep.subr.bf16.mxu0 0
      %457 = vmatpush1.bf16.xpose.msra.mxu0 0
      %458 = vmatprep.subr.bf16.mxu0 0
      %459 = vmatpush1.bf16.xpose.msra.mxu0 0
      %460 = vmatprep.subr.bf16.mxu0 0
      %461 = vmatpush1.bf16.xpose.msra.mxu0 0
      %462 = vmatprep.subr.bf16.mxu0 0
      %463 = vmatpush1.bf16.xpose.msra.mxu0 0
      %464 = vmatprep.subr.bf16.mxu0 0
      %465 = vmatpush1.bf16.xpose.msra.mxu0 0
      %466 = vmatprep.subr.bf16.mxu0 0
      %467 = vmatpush1.bf16.xpose.msra.mxu0 0
      %468 = vmatprep.subr.bf16.mxu0 0
      %469 = vmatpush1.bf16.xpose.msra.mxu0 0
      %470 = vmatprep.subr.bf16.mxu0 0
      %471 = vmatpush1.bf16.xpose.msra.mxu0 0
      %472 = vmatprep.subr.bf16.mxu0 0
      %473 = vmatpush1.bf16.xpose.msra.mxu0 0
      %474 = vmatprep.subr.bf16.mxu0 0
      %475 = vmatpush1.bf16.xpose.msra.mxu0 0
      %476 = vmatprep.subr.bf16.mxu0 0
      %477 = vmatpush1.bf16.xpose.msra.mxu0 0
      %478 = vmatprep.subr.bf16.mxu0 0
      %479 = vmatpush1.bf16.xpose.msra.mxu0 0
      %480 = vmatprep.subr.bf16.mxu0 0
      %481 = vmatpush1.bf16.xpose.msra.mxu0 0
      %482 = vmatprep.mubr.bf16.mxu0 0
      %483 = vmatmul.mubr.bf16.gmra.mrb[0].mxu0 %v447
      %v484 = vpop.f32.mrb[0].mxu0
      %v485 = vadd.f32 0.0, %v484
      %v486 = vpop.f32.mrb[0].mxu0
      %v487 = vpop.f32.mrb[0].mxu0
      %v488 = vpop.f32.mrb[0].mxu0
      %489 = vdwg.mxu0
      %v490 = vmul.f32 %v485, 0.088388346
      %v491 = vlaneseq
      %v492 = vshrl.u32 %v491, 7
      %v493 = vlaneseq
      %v494 = vand.u32 %v493, 127
      %vm495 = vcmp.ge.s32.totalorder %v492, %v494
      %v496 = vsel %vm495, %v490, -1e+30
      %vm497 = vcmask 64512
      %v498 = vsel %vm497, %v496, -inf
      %499 = vmax.xlane.f32.xlu0 %v498
      %v500 = vpop.xlane.xlu0 %499
      %v501 = vsub.f32 %v496, %v500
      %v502 = vmul.f32 %v501, 1.442695
      %v503 = vpow.pop %v502
      %v504 = vsel %vm497, %v503, 0.0
      %505 = vadd.xlane.f32.xlu0 %v504
      %v506 = vpop.xlane.xlu0 %505
      %v507 = vrcp.pop %v506
      %v508 = vmul.f32 %v503, %v507
      %v509 = vpack.c.bf16 %v508, %v508
      %v511 = vsel %vm497, %v509, 0
      %vm513 = vcmask 1043456
      %v515 = vsel %vm513, %v449, 0
      %517 = vmatprep.subr.bf16.mxu0 0
      %518 = vmatpush1.bf16.msra.mxu0 %v515
      %519 = vmatprep.subr.bf16.mxu0 0
      %520 = vmatpush1.bf16.msra.mxu0 0
      %521 = vmatprep.subr.bf16.mxu0 0
      %522 = vmatpush1.bf16.msra.mxu0 0
      %523 = vmatprep.subr.bf16.mxu0 0
      %524 = vmatpush1.bf16.msra.mxu0 0
      %525 = vmatprep.subr.bf16.mxu0 0
      %526 = vmatpush1.bf16.msra.mxu0 0
      %527 = vmatprep.subr.bf16.mxu0 0
      %528 = vmatpush1.bf16.msra.mxu0 0
      %529 = vmatprep.subr.bf16.mxu0 0
      %530 = vmatpush1.bf16.msra.mxu0 0
      %531 = vmatprep.subr.bf16.mxu0 0
      %532 = vmatpush1.bf16.msra.mxu0 0
      %533 = vmatprep.subr.bf16.mxu0 0
      %534 = vmatpush1.bf16.msra.mxu0 0
      %535 = vmatprep.subr.bf16.mxu0 0
      %536 = vmatpush1.bf16.msra.mxu0 0
      %537 = vmatprep.subr.bf16.mxu0 0
      %538 = vmatpush1.bf16.msra.mxu0 0
      %539 = vmatprep.subr.bf16.mxu0 0
      %540 = vmatpush1.bf16.msra.mxu0 0
      %541 = vmatprep.subr.bf16.mxu0 0
      %542 = vmatpush1.bf16.msra.mxu0 0
      %543 = vmatprep.subr.bf16.mxu0 0
      %544 = vmatpush1.bf16.msra.mxu0 0
      %545 = vmatprep.subr.bf16.mxu0 0
      %546 = vmatpush1.bf16.msra.mxu0 0
      %547 = vmatprep.subr.bf16.mxu0 0
      %548 = vmatpush1.bf16.msra.mxu0 0
      %549 = vmatprep.mubr.bf16.mxu0 0
      %550 = vmatmul.mubr.bf16.gmra.mrb[0].mxu0 %v511
      %v551 = vpop.f32.mrb[0].mxu0
      %v552 = vadd.f32 0.0, %v551
      %v553 = vpop.f32.mrb[0].mxu0
      %v554 = vpop.f32.mrb[0].mxu0
      %v555 = vpop.f32.mrb[0].mxu0
      %556 = vdwg.mxu0
      %v557 = vpack.c.bf16 %v552, %v552
      %v558 = vld [vmem:[#allocation12] sm:$0xf]
      %v559 = vld [vmem:[#allocation12 + $0x4] sm:$0xf]
      %v560 = vld [vmem:[#allocation12 + $0x8] sm:$0xf]
      %v561 = vld [vmem:[#allocation12 + $0xc] sm:$0xf]
      %v562 = vld [vmem:[#allocation12 + $0x10] sm:$0xf]
      %v563 = vld [vmem:[#allocation12 + $0x14] sm:$0xf]
      %v564 = vld [vmem:[#allocation12 + $0x18] sm:$0xf]
      %v565 = vld [vmem:[#allocation12 + $0x1c] sm:$0xf]
      %v566 = vld [vmem:[#allocation12 + $0x20] sm:$0xf]
      %v567 = vld [vmem:[#allocation12 + $0x24] sm:$0xf]
      %v568 = vld [vmem:[#allocation12 + $0x28] sm:$0xf]
      %v569 = vld [vmem:[#allocation12 + $0x2c] sm:$0xf]
      %v570 = vld [vmem:[#allocation12 + $0x30] sm:$0xf]
      %v571 = vld [vmem:[#allocation12 + $0x34] sm:$0xf]
      %v572 = vld [vmem:[#allocation12 + $0x38] sm:$0xf]
      %v573 = vld [vmem:[#allocation12 + $0x3c] sm:$0xf]
      %v574 = vld [vmem:[#allocation14] sm:$0x1]
      %v576 = vlaneseq
      %v577 = vshrl.u32 %v576, 7
      %v578 = vsub.s32 0, %v577
      %v579 = vrot.slane %v574, %v578
      %v597 = vunpack.c.l.b16 %v558
      %v598 = vunpack.c.l.b16 %v559
      %v599 = vunpack.c.l.b16 %v560
      %v600 = vunpack.c.l.b16 %v561
      %v601 = vunpack.c.l.b16 %v562
      %v602 = vunpack.c.l.b16 %v563
      %v603 = vunpack.c.l.b16 %v564
      %v604 = vunpack.c.l.b16 %v565
      %v605 = vunpack.c.l.b16 %v566
      %v606 = vunpack.c.l.b16 %v567
      %v607 = vunpack.c.l.b16 %v568
      %v608 = vunpack.c.l.b16 %v569
      %v609 = vunpack.c.l.b16 %v570
      %v610 = vunpack.c.l.b16 %v571
      %v611 = vunpack.c.l.b16 %v572
      %v612 = vunpack.c.l.b16 %v573
      %v613 = vpack.c.b16 %v598, %v597
      %v614 = vpack.c.b16 %v600, %v599
      %v615 = vpack.c.b16 %v602, %v601
      %v616 = vpack.c.b16 %v604, %v603
      %v617 = vpack.c.b16 %v606, %v605
      %v618 = vpack.c.b16 %v608, %v607
      %v619 = vpack.c.b16 %v610, %v609
      %v620 = vpack.c.b16 %v612, %v611
      %629 = vmatprep.subr.bf16.mxu0 0
      %630 = vmatpush1.bf16.msra.mxu0 %v613
      %631 = vmatprep.subr.bf16.mxu0 0
      %632 = vmatpush1.bf16.msra.mxu0 %v614
      %633 = vmatprep.subr.bf16.mxu0 0
      %634 = vmatpush1.bf16.msra.mxu0 %v615
      %635 = vmatprep.subr.bf16.mxu0 0
      %636 = vmatpush1.bf16.msra.mxu0 %v616
      %637 = vmatprep.subr.bf16.mxu0 0
      %638 = vmatpush1.bf16.msra.mxu0 %v617
      %639 = vmatprep.subr.bf16.mxu0 0
      %640 = vmatpush1.bf16.msra.mxu0 %v618
      %641 = vmatprep.subr.bf16.mxu0 0
      %642 = vmatpush1.bf16.msra.mxu0 %v619
      %643 = vmatprep.subr.bf16.mxu0 0
      %644 = vmatpush1.bf16.msra.mxu0 %v620
      %645 = vmatprep.subr.bf16.mxu0 0
      %646 = vmatpush1.bf16.msra.mxu0 0
      %647 = vmatprep.subr.bf16.mxu0 0
      %648 = vmatpush1.bf16.msra.mxu0 0
      %649 = vmatprep.subr.bf16.mxu0 0
      %650 = vmatpush1.bf16.msra.mxu0 0
      %651 = vmatprep.subr.bf16.mxu0 0
      %652 = vmatpush1.bf16.msra.mxu0 0
      %653 = vmatprep.subr.bf16.mxu0 0
      %654 = vmatpush1.bf16.msra.mxu0 0
      %655 = vmatprep.subr.bf16.mxu0 0
      %656 = vmatpush1.bf16.msra.mxu0 0
      %657 = vmatprep.subr.bf16.mxu0 0
      %658 = vmatpush1.bf16.msra.mxu0 0
      %659 = vmatprep.subr.bf16.mxu0 0
      %660 = vmatpush1.bf16.msra.mxu0 0
      %661 = vmatprep.mubr.bf16.mxu0 0
      %662 = vmatmul.mubr.bf16.gmra.mrb[0].mxu0 %v557
      %v663 = vpop.f32.mrb[0].mxu0
      %v664 = vadd.f32 %v579, %v663
      %v665 = vpop.f32.mrb[0].mxu0
      %v666 = vpop.f32.mrb[0].mxu0
      %v667 = vpop.f32.mrb[0].mxu0
      %668 = vdwg.mxu0
      %v669 = vunpack.c.l.bf16 %v188
      %v670 = vadd.f32 %v669, %v664
      %v671 = vpack.c.bf16 %v670, %v670
      %v672 = vld [vmem:[#allocation15] sm:$0xff]
      %v673 = vld [vmem:[#allocation15 + $0x8] sm:$0xff]
      %v674 = vld [vmem:[#allocation15 + $0x10] sm:$0xff]
      %v675 = vld [vmem:[#allocation15 + $0x18] sm:$0xff]
      %v676 = vld [vmem:[#allocation15 + $0x20] sm:$0xff]
      %v677 = vld [vmem:[#allocation15 + $0x28] sm:$0xff]
      %v678 = vld [vmem:[#allocation15 + $0x30] sm:$0xff]
      %v679 = vld [vmem:[#allocation15 + $0x38] sm:$0xff]
      %v680 = vld [vmem:[#allocation15 + $0x40] sm:$0xff]
      %v681 = vld [vmem:[#allocation15 + $0x48] sm:$0xff]
      %v682 = vld [vmem:[#allocation15 + $0x50] sm:$0xff]
      %v683 = vld [vmem:[#allocation15 + $0x58] sm:$0xff]
      %v684 = vld [vmem:[#allocation15 + $0x60] sm:$0xff]
      %v685 = vld [vmem:[#allocation15 + $0x68] sm:$0xff]
      %v686 = vld [vmem:[#allocation15 + $0x70] sm:$0xff]
      %v687 = vld [vmem:[#allocation15 + $0x78] sm:$0xff]
      %v688 = vld [vmem:[#allocation15 + $0x80] sm:$0xff]
      %v689 = vld [vmem:[#allocation15 + $0x88] sm:$0xff]
      %v690 = vld [vmem:[#allocation15 + $0x90] sm:$0xff]
      %v691 = vld [vmem:[#allocation15 + $0x98] sm:$0xff]
      %v692 = vld [vmem:[#allocation15 + $0xa0] sm:$0xff]
      %v693 = vld [vmem:[#allocation15 + $0xa8] sm:$0xff]
      %v694 = vld [vmem:[#allocation15 + $0xb0] sm:$0xff]
      %v695 = vld [vmem:[#allocation15 + $0xb8] sm:$0xff]
      %v696 = vld [vmem:[#allocation15 + $0xc0] sm:$0xff]
      %v697 = vld [vmem:[#allocation15 + $0xc8] sm:$0xff]
      %v698 = vld [vmem:[#allocation15 + $0xd0] sm:$0xff]
      %v699 = vld [vmem:[#allocation15 + $0xd8] sm:$0xff]
      %v700 = vld [vmem:[#allocation15 + $0xe0] sm:$0xff]
      %v701 = vld [vmem:[#allocation15 + $0xe8] sm:$0xff]
      %v702 = vld [vmem:[#allocation15 + $0xf0] sm:$0xff]
      %v703 = vld [vmem:[#allocation15 + $0xf8] sm:$0xff]
      %v704 = vld [vmem:[#allocation17] sm:$0xf]
      %v706 = vlaneseq
      %v707 = vshrl.u32 %v706, 7
      %v708 = vsub.s32 0, %v707
      %v709 = vrot.slane %v704, %v708
      %v710 = vlaneseq
      %v711 = vshrl.u32 %v710, 7
      %v712 = vsub.s32 1, %v711
      %v713 = vrot.slane %v704, %v712
      %v714 = vlaneseq
      %v715 = vshrl.u32 %v714, 7
      %v716 = vsub.s32 2, %v715
      %v717 = vrot.slane %v704, %v716
      %v718 = vlaneseq
      %v719 = vshrl.u32 %v718, 7
      %v720 = vsub.s32 3, %v719
      %v721 = vrot.slane %v704, %v720
      %v758 = vunpack.c.l.b16 %v672
      %v759 = vunpack.c.h.b16 %v672
      %v760 = vunpack.c.l.b16 %v673
      %v761 = vunpack.c.h.b16 %v673
      %v762 = vunpack.c.l.b16 %v674
      %v763 = vunpack.c.h.b16 %v674
      %v764 = vunpack.c.l.b16 %v675
      %v765 = vunpack.c.h.b16 %v675
      %v766 = vunpack.c.l.b16 %v676
      %v767 = vunpack.c.h.b16 %v676
      %v768 = vunpack.c.l.b16 %v677
      %v769 = vunpack.c.h.b16 %v677
      %v770 = vunpack.c.l.b16 %v678
      %v771 = vunpack.c.h.b16 %v678
      %v772 = vunpack.c.l.b16 %v679
      %v773 = vunpack.c.h.b16 %v679
      %v774 = vunpack.c.l.b16 %v680
      %v775 = vunpack.c.h.b16 %v680
      %v776 = vunpack.c.l.b16 %v681
      %v777 = vunpack.c.h.b16 %v681
      %v778 = vunpack.c.l.b16 %v682
      %v779 = vunpack.c.h.b16 %v682
      %v780 = vunpack.c.l.b16 %v683
      %v781 = vunpack.c.h.b16 %v683
      %v782 = vunpack.c.l.b16 %v684
      %v783 = vunpack.c.h.b16 %v684
      %v784 = vunpack.c.l.b16 %v685
      %v785 = vunpack.c.h.b16 %v685
      %v786 = vunpack.c.l.b16 %v686
      %v787 = vunpack.c.h.b16 %v686
      %v788 = vunpack.c.l.b16 %v687
      %v789 = vunpack.c.h.b16 %v687
      %v790 = vunpack.c.l.b16 %v688
      %v791 = vunpack.c.h.b16 %v688
      %v792 = vunpack.c.l.b16 %v689
      %v793 = vunpack.c.h.b16 %v689
      %v794 = vunpack.c.l.b16 %v690
      %v795 = vunpack.c.h.b16 %v690
      %v796 = vunpack.c.l.b16 %v691
      %v797 = vunpack.c.h.b16 %v691
      %v798 = vunpack.c.l.b16 %v692
      %v799 = vunpack.c.h.b16 %v692
      %v800 = vunpack.c.l.b16 %v693
      %v801 = vunpack.c.h.b16 %v693
      %v802 = vunpack.c.l.b16 %v694
      %v803 = vunpack.c.h.b16 %v694
      %v804 = vunpack.c.l.b16 %v695
      %v805 = vunpack.c.h.b16 %v695
      %v806 = vunpack.c.l.b16 %v696
      %v807 = vunpack.c.h.b16 %v696
      %v808 = vunpack.c.l.b16 %v697
      %v809 = vunpack.c.h.b16 %v697
      %v810 = vunpack.c.l.b16 %v698
      %v811 = vunpack.c.h.b16 %v698
      %v812 = vunpack.c.l.b16 %v699
      %v813 = vunpack.c.h.b16 %v699
      %v814 = vunpack.c.l.b16 %v700
      %v815 = vunpack.c.h.b16 %v700
      %v816 = vunpack.c.l.b16 %v701
      %v817 = vunpack.c.h.b16 %v701
      %v818 = vunpack.c.l.b16 %v702
      %v819 = vunpack.c.h.b16 %v702
      %v820 = vunpack.c.l.b16 %v703
      %v821 = vunpack.c.h.b16 %v703
      %v822 = vpack.c.b16 %v762, %v758
      %v823 = vpack.c.b16 %v763, %v759
      %v824 = vpack.c.b16 %v764, %v760
      %v825 = vpack.c.b16 %v765, %v761
      %v826 = vpack.c.b16 %v770, %v766
      %v827 = vpack.c.b16 %v771, %v767
      %v828 = vpack.c.b16 %v772, %v768
      %v829 = vpack.c.b16 %v773, %v769
      %v830 = vpack.c.b16 %v778, %v774
      %v831 = vpack.c.b16 %v779, %v775
      %v832 = vpack.c.b16 %v780, %v776
      %v833 = vpack.c.b16 %v781, %v777
      %v834 = vpack.c.b16 %v786, %v782
      %v835 = vpack.c.b16 %v787, %v783
      %v836 = vpack.c.b16 %v788, %v784
      %v837 = vpack.c.b16 %v789, %v785
      %v838 = vpack.c.b16 %v794, %v790
      %v839 = vpack.c.b16 %v795, %v791
      %v840 = vpack.c.b16 %v796, %v792
      %v841 = vpack.c.b16 %v797, %v793
      %v842 = vpack.c.b16 %v802, %v798
      %v843 = vpack.c.b16 %v803, %v799
      %v844 = vpack.c.b16 %v804, %v800
      %v845 = vpack.c.b16 %v805, %v801
      %v846 = vpack.c.b16 %v810, %v806
      %v847 = vpack.c.b16 %v811, %v807
      %v848 = vpack.c.b16 %v812, %v808
      %v849 = vpack.c.b16 %v813, %v809
      %v850 = vpack.c.b16 %v818, %v814
      %v851 = vpack.c.b16 %v819, %v815
      %v852 = vpack.c.b16 %v820, %v816
      %v853 = vpack.c.b16 %v821, %v817
      %886 = vmatprep.subr.bf16.mxu0 %v823
      %887 = vmatpush1.bf16.msra.mxu0 %v822
      %888 = vmatprep.subr.bf16.mxu0 %v827
      %889 = vmatpush1.bf16.msra.mxu0 %v826
      %890 = vmatprep.subr.bf16.mxu0 %v831
      %891 = vmatpush1.bf16.msra.mxu0 %v830
      %892 = vmatprep.subr.bf16.mxu0 %v835
      %893 = vmatpush1.bf16.msra.mxu0 %v834
      %894 = vmatprep.subr.bf16.mxu0 %v839
      %895 = vmatpush1.bf16.msra.mxu0 %v838
      %896 = vmatprep.subr.bf16.mxu0 %v843
      %897 = vmatpush1.bf16.msra.mxu0 %v842
      %898 = vmatprep.subr.bf16.mxu0 %v847
      %899 = vmatpush1.bf16.msra.mxu0 %v846
      %900 = vmatprep.subr.bf16.mxu0 %v851
      %901 = vmatpush1.bf16.msra.mxu0 %v850
      %902 = vmatprep.subr.bf16.mxu0 0
      %903 = vmatpush1.bf16.msra.mxu0 0
      %904 = vmatprep.subr.bf16.mxu0 0
      %905 = vmatpush1.bf16.msra.mxu0 0
      %906 = vmatprep.subr.bf16.mxu0 0
      %907 = vmatpush1.bf16.msra.mxu0 0
      %908 = vmatprep.subr.bf16.mxu0 0
      %909 = vmatpush1.bf16.msra.mxu0 0
      %910 = vmatprep.subr.bf16.mxu0 0
      %911 = vmatpush1.bf16.msra.mxu0 0
      %912 = vmatprep.subr.bf16.mxu0 0
      %913 = vmatpush1.bf16.msra.mxu0 0
      %914 = vmatprep.subr.bf16.mxu0 0
      %915 = vmatpush1.bf16.msra.mxu0 0
      %916 = vmatprep.subr.bf16.mxu0 0
      %917 = vmatpush1.bf16.msra.mxu0 0
      %918 = vmatprep.mubr.bf16.mxu0 0
      %919 = vmatmul.mubr.bf16.gmra.mrb[0].mxu0 %v671
      %v920 = vpop.f32.mrb[0].mxu0
      %v921 = vadd.f32 %v709, %v920
      %v922 = vpop.f32.mrb[0].mxu0
      %v923 = vadd.f32 %v713, %v922
      %v924 = vpop.f32.mrb[0].mxu0
      %v925 = vpop.f32.mrb[0].mxu0
      %926 = vdwg.mxu0
      %927 = vmatprep.subr.bf16.mxu0 %v825
      %928 = vmatpush1.bf16.msra.mxu0 %v824
      %929 = vmatprep.subr.bf16.mxu0 %v829
      %930 = vmatpush1.bf16.msra.mxu0 %v828
      %931 = vmatprep.subr.bf16.mxu0 %v833
      %932 = vmatpush1.bf16.msra.mxu0 %v832
      %933 = vmatprep.subr.bf16.mxu0 %v837
      %934 = vmatpush1.bf16.msra.mxu0 %v836
      %935 = vmatprep.subr.bf16.mxu0 %v841
      %936 = vmatpush1.bf16.msra.mxu0 %v840
      %937 = vmatprep.subr.bf16.mxu0 %v845
      %938 = vmatpush1.bf16.msra.mxu0 %v844
      %939 = vmatprep.subr.bf16.mxu0 %v849
      %940 = vmatpush1.bf16.msra.mxu0 %v848
      %941 = vmatprep.subr.bf16.mxu0 %v853
      %942 = vmatpush1.bf16.msra.mxu0 %v852
      %943 = vmatprep.subr.bf16.mxu0 0
      %944 = vmatpush1.bf16.msra.mxu0 0
      %945 = vmatprep.subr.bf16.mxu0 0
      %946 = vmatpush1.bf16.msra.mxu0 0
      %947 = vmatprep.subr.bf16.mxu0 0
      %948 = vmatpush1.bf16.msra.mxu0 0
      %949 = vmatprep.subr.bf16.mxu0 0
      %950 = vmatpush1.bf16.msra.mxu0 0
      %951 = vmatprep.subr.bf16.mxu0 0
      %952 = vmatpush1.bf16.msra.mxu0 0
      %953 = vmatprep.subr.bf16.mxu0 0
      %954 = vmatpush1.bf16.msra.mxu0 0
      %955 = vmatprep.subr.bf16.mxu0 0
      %956 = vmatpush1.bf16.msra.mxu0 0
      %957 = vmatprep.subr.bf16.mxu0 0
      %958 = vmatpush1.bf16.msra.mxu0 0
      %959 = vmatprep.mubr.bf16.mxu0 0
      %960 = vmatmul.mubr.bf16.gmra.mrb[0].mxu0 %v671
      %v961 = vpop.f32.mrb[0].mxu0
      %v962 = vadd.f32 %v717, %v961
      %v963 = vpop.f32.mrb[0].mxu0
      %v964 = vadd.f32 %v721, %v963
      %v965 = vpop.f32.mrb[0].mxu0
      %v966 = vpop.f32.mrb[0].mxu0
      %967 = vdwg.mxu0
      %v968 = vmul.f32 %v921, %v921
      %v969 = vmul.f32 %v923, %v923
      %v970 = vmul.f32 %v962, %v962
      %v971 = vmul.f32 %v964, %v964
      %v972 = vmul.f32 %v921, %v968
      %v973 = vmul.f32 %v923, %v969
      %v974 = vmul.f32 %v962, %v970
      %v975 = vmul.f32 %v964, %v971
      %v976 = vmul.f32 %v972, 0.044715
      %v977 = vmul.f32 %v973, 0.044715
      %v978 = vmul.f32 %v974, 0.044715
      %v979 = vmul.f32 %v975, 0.044715
      %v980 = vadd.f32 %v921, %v976
      %v981 = vadd.f32 %v923, %v977
      %v982 = vadd.f32 %v962, %v978
      %v983 = vadd.f32 %v964, %v979
      %v984 = vmul.f32 %v980, 0.7978846
      %v985 = vmul.f32 %v981, 0.7978846
      %v986 = vmul.f32 %v982, 0.7978846
      %v987 = vmul.f32 %v983, 0.7978846
      %v988 = vtanh.pop %v984
      %v989 = vtanh.pop %v985
      %v990 = vtanh.pop %v986
      %v991 = vtanh.pop %v987
      %v992 = vadd.f32 %v988, 1.0
      %v993 = vadd.f32 %v989, 1.0
      %v994 = vadd.f32 %v990, 1.0
      %v995 = vadd.f32 %v991, 1.0
      %v996 = vmul.f32 %v992, 0.5
      %v997 = vmul.f32 %v993, 0.5
      %v998 = vmul.f32 %v994, 0.5
      %v999 = vmul.f32 %v995, 0.5
      %v1000 = vmul.f32 %v921, %v996
      %v1001 = vmul.f32 %v923, %v997
      %v1002 = vmul.f32 %v962, %v998
      %v1003 = vmul.f32 %v964, %v999
      %v1004 = vpack.c.bf16 %v1000, %v1000
      %v1005 = vpack.c.bf16 %v1001, %v1001
      %v1006 = vpack.c.bf16 %v1002, %v1002
      %v1007 = vpack.c.bf16 %v1003, %v1003
      %v1008 = vld [vmem:[#allocation18] sm:$0xf]
      %v1009 = vld [vmem:[#allocation18 + $0x4] sm:$0xf]
      %v1010 = vld [vmem:[#allocation18 + $0x8] sm:$0xf]
      %v1011 = vld [vmem:[#allocation18 + $0xc] sm:$0xf]
      %v1012 = vld [vmem:[#allocation18 + $0x10] sm:$0xf]
      %v1013 = vld [vmem:[#allocation18 + $0x14] sm:$0xf]
      %v1014 = vld [vmem:[#allocation18 + $0x18] sm:$0xf]
      %v1015 = vld [vmem:[#allocation18 + $0x1c] sm:$0xf]
      %v1016 = vld [vmem:[#allocation18 + $0x20] sm:$0xf]
      %v1017 = vld [vmem:[#allocation18 + $0x24] sm:$0xf]
      %v1018 = vld [vmem:[#allocation18 + $0x28] sm:$0xf]
      %v1019 = vld [vmem:[#allocation18 + $0x2c] sm:$0xf]
      %v1020 = vld [vmem:[#allocation18 + $0x30] sm:$0xf]
      %v1021 = vld [vmem:[#allocation18 + $0x34] sm:$0xf]
      %v1022 = vld [vmem:[#allocation18 + $0x38] sm:$0xf]
      %v1023 = vld [vmem:[#allocation18 + $0x3c] sm:$0xf]
      %v1024 = vld [vmem:[#allocation18 + $0x40] sm:$0xf]
      %v1025 = vld [vmem:[#allocation18 + $0x44] sm:$0xf]
      %v1026 = vld [vmem:[#allocation18 + $0x48] sm:$0xf]
      %v1027 = vld [vmem:[#allocation18 + $0x4c] sm:$0xf]
      %v1028 = vld [vmem:[#allocation18 + $0x50] sm:$0xf]
      %v1029 = vld [vmem:[#allocation18 + $0x54] sm:$0xf]
      %v1030 = vld [vmem:[#allocation18 + $0x58] sm:$0xf]
      %v1031 = vld [vmem:[#allocation18 + $0x5c] sm:$0xf]
      %v1032 = vld [vmem:[#allocation18 + $0x60] sm:$0xf]
      %v1033 = vld [vmem:[#allocation18 + $0x64] sm:$0xf]
      %v1034 = vld [vmem:[#allocation18 + $0x68] sm:$0xf]
      %v1035 = vld [vmem:[#allocation18 + $0x6c] sm:$0xf]
      %v1036 = vld [vmem:[#allocation18 + $0x70] sm:$0xf]
      %v1037 = vld [vmem:[#allocation18 + $0x74] sm:$0xf]
      %v1038 = vld [vmem:[#allocation18 + $0x78] sm:$0xf]
      %v1039 = vld [vmem:[#allocation18 + $0x7c] sm:$0xf]
      %v1040 = vld [vmem:[#allocation18 + $0x80] sm:$0xf]
      %v1041 = vld [vmem:[#allocation18 + $0x84] sm:$0xf]
      %v1042 = vld [vmem:[#allocation18 + $0x88] sm:$0xf]
      %v1043 = vld [vmem:[#allocation18 + $0x8c] sm:$0xf]
      %v1044 = vld [vmem:[#allocation18 + $0x90] sm:$0xf]
      %v1045 = vld [vmem:[#allocation18 + $0x94] sm:$0xf]
      %v1046 = vld [vmem:[#allocation18 + $0x98] sm:$0xf]
      %v1047 = vld [vmem:[#allocation18 + $0x9c] sm:$0xf]
      %v1048 = vld [vmem:[#allocation18 + $0xa0] sm:$0xf]
      %v1049 = vld [vmem:[#allocation18 + $0xa4] sm:$0xf]
      %v1050 = vld [vmem:[#allocation18 + $0xa8] sm:$0xf]
      %v1051 = vld [vmem:[#allocation18 + $0xac] sm:$0xf]
      %v1052 = vld [vmem:[#allocation18 + $0xb0] sm:$0xf]
      %v1053 = vld [vmem:[#allocation18 + $0xb4] sm:$0xf]
      %v1054 = vld [vmem:[#allocation18 + $0xb8] sm:$0xf]
      %v1055 = vld [vmem:[#allocation18 + $0xbc] sm:$0xf]
      %v1056 = vld [vmem:[#allocation18 + $0xc0] sm:$0xf]
      %v1057 = vld [vmem:[#allocation18 + $0xc4] sm:$0xf]
      %v1058 = vld [vmem:[#allocation18 + $0xc8] sm:$0xf]
      %v1059 = vld [vmem:[#allocation18 + $0xcc] sm:$0xf]
      %v1060 = vld [vmem:[#allocation18 + $0xd0] sm:$0xf]
      %v1061 = vld [vmem:[#allocation18 + $0xd4] sm:$0xf]
      %v1062 = vld [vmem:[#allocation18 + $0xd8] sm:$0xf]
      %v1063 = vld [vmem:[#allocation18 + $0xdc] sm:$0xf]
      %v1064 = vld [vmem:[#allocation18 + $0xe0] sm:$0xf]
      %v1065 = vld [vmem:[#allocation18 + $0xe4] sm:$0xf]
      %v1066 = vld [vmem:[#allocation18 + $0xe8] sm:$0xf]
      %v1067 = vld [vmem:[#allocation18 + $0xec] sm:$0xf]
      %v1068 = vld [vmem:[#allocation18 + $0xf0] sm:$0xf]
      %v1069 = vld [vmem:[#allocation18 + $0xf4] sm:$0xf]
      %v1070 = vld [vmem:[#allocation18 + $0xf8] sm:$0xf]
      %v1071 = vld [vmem:[#allocation18 + $0xfc] sm:$0xf]
      %v1072 = vld [vmem:[#allocation20] sm:$0x1]
      %v1074 = vlaneseq
      %v1075 = vshrl.u32 %v1074, 7
      %v1076 = vsub.s32 0, %v1075
      %v1077 = vrot.slane %v1072, %v1076
      %v1143 = vunpack.c.l.b16 %v1008
      %v1144 = vunpack.c.l.b16 %v1009
      %v1145 = vunpack.c.l.b16 %v1010
      %v1146 = vunpack.c.l.b16 %v1011
      %v1147 = vunpack.c.l.b16 %v1012
      %v1148 = vunpack.c.l.b16 %v1013
      %v1149 = vunpack.c.l.b16 %v1014
      %v1150 = vunpack.c.l.b16 %v1015
      %v1151 = vunpack.c.l.b16 %v1016
      %v1152 = vunpack.c.l.b16 %v1017
      %v1153 = vunpack.c.l.b16 %v1018
      %v1154 = vunpack.c.l.b16 %v1019
      %v1155 = vunpack.c.l.b16 %v1020
      %v1156 = vunpack.c.l.b16 %v1021
      %v1157 = vunpack.c.l.b16 %v1022
      %v1158 = vunpack.c.l.b16 %v1023
      %v1159 = vunpack.c.l.b16 %v1024
      %v1160 = vunpack.c.l.b16 %v1025
      %v1161 = vunpack.c.l.b16 %v1026
      %v1162 = vunpack.c.l.b16 %v1027
      %v1163 = vunpack.c.l.b16 %v1028
      %v1164 = vunpack.c.l.b16 %v1029
      %v1165 = vunpack.c.l.b16 %v1030
      %v1166 = vunpack.c.l.b16 %v1031
      %v1167 = vunpack.c.l.b16 %v1032
      %v1168 = vunpack.c.l.b16 %v1033
      %v1169 = vunpack.c.l.b16 %v1034
      %v1170 = vunpack.c.l.b16 %v1035
      %v1171 = vunpack.c.l.b16 %v1036
      %v1172 = vunpack.c.l.b16 %v1037
      %v1173 = vunpack.c.l.b16 %v1038
      %v1174 = vunpack.c.l.b16 %v1039
      %v1175 = vunpack.c.l.b16 %v1040
      %v1176 = vunpack.c.l.b16 %v1041
      %v1177 = vunpack.c.l.b16 %v1042
      %v1178 = vunpack.c.l.b16 %v1043
      %v1179 = vunpack.c.l.b16 %v1044
      %v1180 = vunpack.c.l.b16 %v1045
      %v1181 = vunpack.c.l.b16 %v1046
      %v1182 = vunpack.c.l.b16 %v1047
      %v1183 = vunpack.c.l.b16 %v1048
      %v1184 = vunpack.c.l.b16 %v1049
      %v1185 = vunpack.c.l.b16 %v1050
      %v1186 = vunpack.c.l.b16 %v1051
      %v1187 = vunpack.c.l.b16 %v1052
      %v1188 = vunpack.c.l.b16 %v1053
      %v1189 = vunpack.c.l.b16 %v1054
      %v1190 = vunpack.c.l.b16 %v1055
      %v1191 = vunpack.c.l.b16 %v1056
      %v1192 = vunpack.c.l.b16 %v1057
      %v1193 = vunpack.c.l.b16 %v1058
      %v1194 = vunpack.c.l.b16 %v1059
      %v1195 = vunpack.c.l.b16 %v1060
      %v1196 = vunpack.c.l.b16 %v1061
      %v1197 = vunpack.c.l.b16 %v1062
      %v1198 = vunpack.c.l.b16 %v1063
      %v1199 = vunpack.c.l.b16 %v1064
      %v1200 = vunpack.c.l.b16 %v1065
      %v1201 = vunpack.c.l.b16 %v1066
      %v1202 = vunpack.c.l.b16 %v1067
      %v1203 = vunpack.c.l.b16 %v1068
      %v1204 = vunpack.c.l.b16 %v1069
      %v1205 = vunpack.c.l.b16 %v1070
      %v1206 = vunpack.c.l.b16 %v1071
      %v1207 = vpack.c.b16 %v1144, %v1143
      %v1208 = vpack.c.b16 %v1146, %v1145
      %v1209 = vpack.c.b16 %v1148, %v1147
      %v1210 = vpack.c.b16 %v1150, %v1149
      %v1211 = vpack.c.b16 %v1152, %v1151
      %v1212 = vpack.c.b16 %v1154, %v1153
      %v1213 = vpack.c.b16 %v1156, %v1155
      %v1214 = vpack.c.b16 %v1158, %v1157
      %v1215 = vpack.c.b16 %v1160, %v1159
      %v1216 = vpack.c.b16 %v1162, %v1161
      %v1217 = vpack.c.b16 %v1164, %v1163
      %v1218 = vpack.c.b16 %v1166, %v1165
      %v1219 = vpack.c.b16 %v1168, %v1167
      %v1220 = vpack.c.b16 %v1170, %v1169
      %v1221 = vpack.c.b16 %v1172, %v1171
      %v1222 = vpack.c.b16 %v1174, %v1173
      %v1223 = vpack.c.b16 %v1176, %v1175
      %v1224 = vpack.c.b16 %v1178, %v1177
      %v1225 = vpack.c.b16 %v1180, %v1179
      %v1226 = vpack.c.b16 %v1182, %v1181
      %v1227 = vpack.c.b16 %v1184, %v1183
      %v1228 = vpack.c.b16 %v1186, %v1185
      %v1229 = vpack.c.b16 %v1188, %v1187
      %v1230 = vpack.c.b16 %v1190, %v1189
      %v1231 = vpack.c.b16 %v1192, %v1191
      %v1232 = vpack.c.b16 %v1194, %v1193
      %v1233 = vpack.c.b16 %v1196, %v1195
      %v1234 = vpack.c.b16 %v1198, %v1197
      %v1235 = vpack.c.b16 %v1200, %v1199
      %v1236 = vpack.c.b16 %v1202, %v1201
      %v1237 = vpack.c.b16 %v1204, %v1203
      %v1238 = vpack.c.b16 %v1206, %v1205
      %1271 = vmatprep.subr.bf16.mxu0 0
      %1272 = vmatpush1.bf16.msra.mxu0 %v1207
      %1273 = vmatprep.subr.bf16.mxu0 0
      %1274 = vmatpush1.bf16.msra.mxu0 %v1208
      %1275 = vmatprep.subr.bf16.mxu0 0
      %1276 = vmatpush1.bf16.msra.mxu0 %v1209
      %1277 = vmatprep.subr.bf16.mxu0 0
      %1278 = vmatpush1.bf16.msra.mxu0 %v1210
      %1279 = vmatprep.subr.bf16.mxu0 0
      %1280 = vmatpush1.bf16.msra.mxu0 %v1211
      %1281 = vmatprep.subr.bf16.mxu0 0
      %1282 = vmatpush1.bf16.msra.mxu0 %v1212
      %1283 = vmatprep.subr.bf16.mxu0 0
      %1284 = vmatpush1.bf16.msra.mxu0 %v1213
      %1285 = vmatprep.subr.bf16.mxu0 0
      %1286 = vmatpush1.bf16.msra.mxu0 %v1214
      %1287 = vmatprep.subr.bf16.mxu0 0
      %1288 = vmatpush1.bf16.msra.mxu0 %v1215
      %1289 = vmatprep.subr.bf16.mxu0 0
      %1290 = vmatpush1.bf16.msra.mxu0 %v1216
      %1291 = vmatprep.subr.bf16.mxu0 0
      %1292 = vmatpush1.bf16.msra.mxu0 %v1217
      %1293 = vmatprep.subr.bf16.mxu0 0
      %1294 = vmatpush1.bf16.msra.mxu0 %v1218
      %1295 = vmatprep.subr.bf16.mxu0 0
      %1296 = vmatpush1.bf16.msra.mxu0 %v1219
      %1297 = vmatprep.subr.bf16.mxu0 0
      %1298 = vmatpush1.bf16.msra.mxu0 %v1220
      %1299 = vmatprep.subr.bf16.mxu0 0
      %1300 = vmatpush1.bf16.msra.mxu0 %v1221
      %1301 = vmatprep.subr.bf16.mxu0 0
      %1302 = vmatpush1.bf16.msra.mxu0 %v1222
      %1303 = vmatprep.mubr.bf16.mxu0 %v1005
      %1304 = vmatmul.mubr.bf16.gmra.mrb[0].mxu0 %v1004
      %v1305 = vpop.f32.mrb[0].mxu0
      %v1306 = vadd.f32 %v1077, %v1305
      %v1307 = vpop.f32.mrb[0].mxu0
      %v1308 = vpop.f32.mrb[0].mxu0
      %v1309 = vpop.f32.mrb[0].mxu0
      %1310 = vdwg.mxu0
      %1311 = vmatprep.subr.bf16.mxu0 0
      %1312 = vmatpush1.bf16.msra.mxu0 %v1223
      %1313 = vmatprep.subr.bf16.mxu0 0
      %1314 = vmatpush1.bf16.msra.mxu0 %v1224
      %1315 = vmatprep.subr.bf16.mxu0 0
      %1316 = vmatpush1.bf16.msra.mxu0 %v1225
      %1317 = vmatprep.subr.bf16.mxu0 0
      %1318 = vmatpush1.bf16.msra.mxu0 %v1226
      %1319 = vmatprep.subr.bf16.mxu0 0
      %1320 = vmatpush1.bf16.msra.mxu0 %v1227
      %1321 = vmatprep.subr.bf16.mxu0 0
      %1322 = vmatpush1.bf16.msra.mxu0 %v1228
      %1323 = vmatprep.subr.bf16.mxu0 0
      %1324 = vmatpush1.bf16.msra.mxu0 %v1229
      %1325 = vmatprep.subr.bf16.mxu0 0
      %1326 = vmatpush1.bf16.msra.mxu0 %v1230
      %1327 = vmatprep.subr.bf16.mxu0 0
      %1328 = vmatpush1.bf16.msra.mxu0 %v1231
      %1329 = vmatprep.subr.bf16.mxu0 0
      %1330 = vmatpush1.bf16.msra.mxu0 %v1232
      %1331 = vmatprep.subr.bf16.mxu0 0
      %1332 = vmatpush1.bf16.msra.mxu0 %v1233
      %1333 = vmatprep.subr.bf16.mxu0 0
      %1334 = vmatpush1.bf16.msra.mxu0 %v1234
      %1335 = vmatprep.subr.bf16.mxu0 0
      %1336 = vmatpush1.bf16.msra.mxu0 %v1235
      %1337 = vmatprep.subr.bf16.mxu0 0
      %1338 = vmatpush1.bf16.msra.mxu0 %v1236
      %1339 = vmatprep.subr.bf16.mxu0 0
      %1340 = vmatpush1.bf16.msra.mxu0 %v1237
      %1341 = vmatprep.subr.bf16.mxu0 0
      %1342 = vmatpush1.bf16.msra.mxu0 %v1238
      %1343 = vmatprep.mubr.bf16.mxu0 %v1007
      %1344 = vmatmul.mubr.bf16.gmra.mrb[0].mxu0 %v1006
      %v1345 = vpop.f32.mrb[0].mxu0
      %v1346 = vadd.f32 %v1306, %v1345
      %v1347 = vpop.f32.mrb[0].mxu0
      %v1348 = vpop.f32.mrb[0].mxu0
      %v1349 = vpop.f32.mrb[0].mxu0
      %1350 = vdwg.mxu0
      %v1351 = vadd.f32 %v670, %v1346
      %v1352 = vpack.c.bf16 %v1351, %v1351
      %1353 = vst [vmem:[#allocation24] sm:$0xf] %v1352
      %1354 = vst [vmem:[#allocation25] sm:$0xf] %v448
      %1355 = vst [vmem:[#allocation27] sm:$0xf] %v449
      %v1358 = vunpack.c.l.s4 1966171168
      %v1359 = vunpack.c.0.s8 %v1358
      %v1360 = vlaneseq
      %v1361 = vshrl.u32 %v1360, 7
      %v1362 = vsub.s32 %v1359, %v1361
      %v1363 = vrot.slane %v1352, %v1362
      %v1364 = vcombine.high %v1363, %v1363
      %v1366 = vunpack.c.l.s4 1966171168
      %v1367 = vunpack.c.0.s8 %v1366
      %v1368 = vlaneseq
      %v1369 = vshrl.u32 %v1368, 7
      %v1370 = vsub.s32 %v1367, %v1369
      %v1371 = vrot.slane %v1364, %v1370
      %v1372 = vcombine.high %v1371, %v1371
      %v1374 = vshrl.u32 %v1372, 16
      %v1376 = vrot.slane %v1374, 7
      %v1377 = vrot.slane %v1376, 1
      %vm1379 = vcmask 1040384
      %vm1380 = vsmask.f32 256
      %vm1381 = vmand %vm1379, %vm1380
      %v1382 = vld [vmem:[#allocation2] sm:$0x1]
      %v1383 = vsel %vm1381, %v1377, %v1382
      %1384 = vst [vmem:[#allocation2] sm:$0x1] %v1383
      %vm1385 = vcmask 0
      %1386 = vst.msk [vmem:[#allocation3] sm:$0x1] %vm1385, -inf
      %1387 = vst.msk [vmem:[#allocation4] sm:$0x1] %vm1385, 0.0
      %1388 = vst.msk [vmem:[#allocation5] sm:$0x1] %vm1385, 0
    $region93: #{tpu_custom_call.1} parent=1 // pred_fallthru
      _
    %v1389 = vld [vmem:[#allocation2] sm:$0x1]
    %v1390 = vld [vmem:[#allocation21] sm:$0xff]
    %v1391 = vld [vmem:[#allocation21 + $0x8] sm:$0xff]
    %v1392 = vld [vmem:[#allocation21 + $0x10] sm:$0xff]
    %v1393 = vld [vmem:[#allocation21 + $0x18] sm:$0xff]
    %v1394 = vld [vmem:[#allocation21 + $0x20] sm:$0xff]
    %v1395 = vld [vmem:[#allocation21 + $0x28] sm:$0xff]
    %v1396 = vld [vmem:[#allocation21 + $0x30] sm:$0xff]
    %v1397 = vld [vmem:[#allocation21 + $0x38] sm:$0xff]
    %v1398 = vld [vmem:[#allocation21 + $0x40] sm:$0xff]
    %v1399 = vld [vmem:[#allocation21 + $0x48] sm:$0xff]
    %v1400 = vld [vmem:[#allocation21 + $0x50] sm:$0xff]
    %v1401 = vld [vmem:[#allocation21 + $0x58] sm:$0xff]
    %v1402 = vld [vmem:[#allocation21 + $0x60] sm:$0xff]
    %v1403 = vld [vmem:[#allocation21 + $0x68] sm:$0xff]
    %v1404 = vld [vmem:[#allocation21 + $0x70] sm:$0xff]
    %v1405 = vld [vmem:[#allocation21 + $0x78] sm:$0xff]
    %v1406 = vld [vmem:[#allocation23] sm:$0x3]
    %v1423 = vunpack.c.l.b16 %v1390
    %v1424 = vunpack.c.h.b16 %v1390
    %v1425 = vunpack.c.l.b16 %v1391
    %v1426 = vunpack.c.h.b16 %v1391
    %v1427 = vunpack.c.l.b16 %v1392
    %v1428 = vunpack.c.h.b16 %v1392
    %v1429 = vunpack.c.l.b16 %v1393
    %v1430 = vunpack.c.h.b16 %v1393
    %v1431 = vunpack.c.l.b16 %v1394
    %v1432 = vunpack.c.h.b16 %v1394
    %v1433 = vunpack.c.l.b16 %v1395
    %v1434 = vunpack.c.h.b16 %v1395
    %v1435 = vunpack.c.l.b16 %v1396
    %v1436 = vunpack.c.h.b16 %v1396
    %v1437 = vunpack.c.l.b16 %v1397
    %v1438 = vunpack.c.h.b16 %v1397
    %v1439 = vunpack.c.l.b16 %v1398
    %v1440 = vunpack.c.h.b16 %v1398
    %v1441 = vunpack.c.l.b16 %v1399
    %v1442 = vunpack.c.h.b16 %v1399
    %v1443 = vunpack.c.l.b16 %v1400
    %v1444 = vunpack.c.h.b16 %v1400
    %v1445 = vunpack.c.l.b16 %v1401
    %v1446 = vunpack.c.h.b16 %v1401
    %v1447 = vunpack.c.l.b16 %v1402
    %v1448 = vunpack.c.h.b16 %v1402
    %v1449 = vunpack.c.l.b16 %v1403
    %v1450 = vunpack.c.h.b16 %v1403
    %v1451 = vunpack.c.l.b16 %v1404
    %v1452 = vunpack.c.h.b16 %v1404
    %v1453 = vunpack.c.l.b16 %v1405
    %v1454 = vunpack.c.h.b16 %v1405
    %v1455 = vpack.c.b16 %v1425, %v1423
    %v1456 = vpack.c.b16 %v1426, %v1424
    %v1457 = vpack.c.b16 %v1429, %v1427
    %v1458 = vpack.c.b16 %v1430, %v1428
    %v1459 = vpack.c.b16 %v1433, %v1431
    %v1460 = vpack.c.b16 %v1434, %v1432
    %v1461 = vpack.c.b16 %v1437, %v1435
    %v1462 = vpack.c.b16 %v1438, %v1436
    %v1463 = vpack.c.b16 %v1441, %v1439
    %v1464 = vpack.c.b16 %v1442, %v1440
    %v1465 = vpack.c.b16 %v1445, %v1443
    %v1466 = vpack.c.b16 %v1446, %v1444
    %v1467 = vpack.c.b16 %v1449, %v1447
    %v1468 = vpack.c.b16 %v1450, %v1448
    %v1469 = vpack.c.b16 %v1453, %v1451
    %v1470 = vpack.c.b16 %v1454, %v1452
    %v1488 = vlaneseq
    %v1489 = vshrl.u32 %v1488, 7
    %v1490 = vsub.s32 0, %v1489
    %v1491 = vrot.slane %v1406, %v1490
    %v1492 = vlaneseq
    %v1493 = vshrl.u32 %v1492, 7
    %v1494 = vsub.s32 1, %v1493
    %v1495 = vrot.slane %v1406, %v1494
    %1498 = vmatprep.subr.bf16.mxu0 %v1456
    %1499 = vmatpush1.bf16.msra.mxu0 %v1455
    %1500 = vmatprep.subr.bf16.mxu0 %v1458
    %1501 = vmatpush1.bf16.msra.mxu0 %v1457
    %1502 = vmatprep.subr.bf16.mxu0 %v1460
    %1503 = vmatpush1.bf16.msra.mxu0 %v1459
    %1504 = vmatprep.subr.bf16.mxu0 %v1462
    %1505 = vmatpush1.bf16.msra.mxu0 %v1461
    %1506 = vmatprep.subr.bf16.mxu0 %v1464
    %1507 = vmatpush1.bf16.msra.mxu0 %v1463
    %1508 = vmatprep.subr.bf16.mxu0 %v1466
    %1509 = vmatpush1.bf16.msra.mxu0 %v1465
    %1510 = vmatprep.subr.bf16.mxu0 %v1468
    %1511 = vmatpush1.bf16.msra.mxu0 %v1467
    %1512 = vmatprep.subr.bf16.mxu0 %v1470
    %1513 = vmatpush1.bf16.msra.mxu0 %v1469
    %1514 = vmatprep.subr.bf16.mxu0 0
    %1515 = vmatpush1.bf16.msra.mxu0 0
    %1516 = vmatprep.subr.bf16.mxu0 0
    %1517 = vmatpush1.bf16.msra.mxu0 0
    %1518 = vmatprep.subr.bf16.mxu0 0
    %1519 = vmatpush1.bf16.msra.mxu0 0
    %1520 = vmatprep.subr.bf16.mxu0 0
    %1521 = vmatpush1.bf16.msra.mxu0 0
    %1522 = vmatprep.subr.bf16.mxu0 0
    %1523 = vmatpush1.bf16.msra.mxu0 0
    %1524 = vmatprep.subr.bf16.mxu0 0
    %1525 = vmatpush1.bf16.msra.mxu0 0
    %1526 = vmatprep.subr.bf16.mxu0 0
    %1527 = vmatpush1.bf16.msra.mxu0 0
    %1528 = vmatprep.subr.bf16.mxu0 0
    %1529 = vmatpush1.bf16.msra.mxu0 0
    %1530 = vmatprep.mubr.bf16.mxu0 0
    %1531 = vmatmul.mubr.bf16.gmra.mrb[0].mxu0 %v1389
    %v1532 = vpop.f32.mrb[0].mxu0
    %v1533 = vadd.f32 %v1491, %v1532
    %v1534 = vpop.f32.mrb[0].mxu0
    %v1535 = vadd.f32 %v1495, %v1534
    %v1536 = vpop.f32.mrb[0].mxu0
    %v1537 = vpop.f32.mrb[0].mxu0
    %1538 = vdwg.mxu0
    %vm1539 = vcmask 1040384
    %v1540 = vsel %vm1539, %v1533, -inf
    %v1541 = vsel %vm1539, %v1535, -inf
    %v1542 = vmax.f32 %v1540, %v1541
    %1543 = vmax.xlane.f32.xlu0 %v1542
    %v1544 = vpop.xlane.xlu0 %1543
    %v1545 = vlaneseq
    %v1546 = vand.u32 %v1545, 127
    %v1547 = vadd.s32 %v1546, 128
    %s1548 = smul.u32 0, 256
    %v1549 = vstv %s1548
    %v1550 = vadd.s32 %v1546, %v1549
    %v1551 = vadd.s32 %v1547, %v1549
    %vm1552 = vcmp.eq.f32.partialorder %v1533, %v1544
    %vm1553 = vcmp.eq.f32.partialorder %v1535, %v1544
    %v1554 = vsel %vm1552, %v1550, 2147483647
    %v1555 = vsel %vm1553, %v1551, 2147483647
    %v1556 = vsel %vm1539, %v1554, 2147483647
    %v1557 = vsel %vm1539, %v1555, 2147483647
    %vm1558 = vcmp.lt.s32.totalorder %v1556, %v1557
    %v1559 = vsel %vm1558, %v1556, %v1557
    %v1560 = vand.u32 %v1559, 65535
    %v1561 = vshra.s32 %v1559, 16
    %v1562 = vcvt.s32.f32 %v1560
    %v1563 = vcvt.s32.f32 %v1561
    %1564 = vmin.xlane.f32.xlu0 %v1563
    %v1565 = vpop.xlane.xlu0 %1564
    %vm1566 = vcmp.eq.f32.partialorder %v1563, %v1565
    %v1567 = vsel %vm1566, %v1562, inf
    %1568 = vmin.xlane.f32.xlu0 %v1567
    %v1569 = vpop.xlane.xlu0 %1568
    %v1570 = vcvt.f32.s32 %v1569
    %v1571 = vcvt.f32.s32 %v1565
    %v1572 = vshll.u32 %v1571, 16
    %v1573 = vadd.s32 %v1572, %v1570
    %v1574 = vld [vmem:[#allocation3] sm:$0x1]
    %v1575 = vmax.f32 %v1574, %v1544
    %v1576 = vld [vmem:[#allocation4] sm:$0x1]
    %v1577 = vsub.f32 %v1574, %v1575
    %v1578 = vmul.f32 %v1577, 1.442695
    %v1579 = vpow.pop %v1578
    %v1580 = vmul.f32 %v1576, %v1579
    %1582 = vset.pattern.permute.xlu0 0
    %1583 = vperm.xlu0 %1582, %v1575
    %v1584 = vpop.permute.xlu0 %1583
    %v1586 = vlaneseq
    %v1587 = vshrl.u32 %v1586, 7
    %v1588 = vsub.s32 0, %v1587
    %v1589 = vrot.slane %v1584, %v1588
    %v1590 = vsub.f32 %v1533, %v1589
    %v1591 = vsub.f32 %v1535, %v1589
    %v1592 = vmul.f32 %v1590, 1.442695
    %v1593 = vpow.pop %v1592
    %v1594 = vmul.f32 %v1591, 1.442695
    %v1595 = vpow.pop %v1594
    %v1596 = vsel %vm1539, %v1593, 0.0
    %v1597 = vsel %vm1539, %v1595, 0.0
    %v1598 = vadd.f32 %v1596, %v1597
    %1599 = vadd.xlane.f32.xlu0 %v1598
    %v1600 = vpop.xlane.xlu0 %1599
    %v1601 = vadd.f32 %v1580, %v1600
    %vm1602 = vcmask 0
    %1603 = vst.msk [vmem:[#allocation4] sm:$0x1] %vm1602, %v1601
    %vm1604 = vcmp.gt.f32.partialorder %v1544, %v1574
    %v1605 = vld [vmem:[#allocation5] sm:$0x1]
    %v1606 = vsel %vm1604, %v1573, %v1605
    %1607 = vst.msk [vmem:[#allocation5] sm:$0x1] %vm1602, %v1606
    %1608 = vst.msk [vmem:[#allocation3] sm:$0x1] %vm1602, %v1575
    // Predicated region
    $region94: #{tpu_custom_call.1} parent=1 // pred_check
      %p1609 = pneg %p184
    $region95: #{tpu_custom_call.1} parent=1 // pred_check_branch
      %1611 = sbr.rel (%p1609) target = $region97
    $region96: #{tpu_custom_call.1} parent=1 // pred_region
      %v1612 = vld [vmem:[#allocation4] sm:$0x1]
      %v1613 = vrcp.pop %v1612
      %v1614 = vmul.f32 1.0, %v1613
      %1615 = vst.msk [vmem:[#allocation28] sm:$0x1] %vm1602, %v1614
      %v1616 = vld [vmem:[#allocation5] sm:$0x1]
      %1617 = vst.msk [vmem:[#allocation30] sm:$0x1] %vm1602, %v1616
    $region97: #{tpu_custom_call.1} parent=1 // pred_fallthru
      _
    // Predicated region
    $region98: #{tpu_custom_call.1} parent=1 // pred_check
      _
    $region99: #{tpu_custom_call.1} parent=1 // pred_check_branch
      %1619 = sbr.rel (0) target = $region101
    $region100: #{tpu_custom_call.1} parent=1 // pred_region
      %s1621 = ssub.s32 64, 64
      %1622 = vsyncadd [#allocation8], %s1621
      %s1624 = sshll.u32 [#allocation24], 4
      %s1625 = int_to_ptr.vmem [resolvable:$true] %s1624
      %1627 = dma.vmem_to_hbm [thread:$0]  %s1625, 64, %s11, [#allocation8]
    $region101: #{tpu_custom_call.1} parent=1 // pred_fallthru
      _
    // Predicated region
    $region102: #{tpu_custom_call.1} parent=1 // pred_check
      _
    $region103: #{tpu_custom_call.1} parent=1 // pred_check_branch
      %1629 = sbr.rel (0) target = $region105
    $region104: #{tpu_custom_call.1} parent=1 // pred_region
      %s1631 = ssub.s32 64, 64
      %1632 = vsyncadd [#allocation26], %s1631
      %s1634 = sshll.u32 [#allocation25], 4
      %s1635 = int_to_ptr.vmem [resolvable:$true] %s1634
      %1637 = dma.vmem_to_hbm [thread:$0]  %s1635, 64, %s12, [#allocation26]
    $region105: #{tpu_custom_call.1} parent=1 // pred_fallthru
      _
    // Predicated region
    $region106: #{tpu_custom_call.1} parent=1 // pred_check
      _
    $region107: #{tpu_custom_call.1} parent=1 // pred_check_branch
      %1639 = sbr.rel (0) target = $region109
    $region108: #{tpu_custom_call.1} parent=1 // pred_region
      %s1641 = ssub.s32 64, 64
      %1642 = vsyncadd [#allocation26], %s1641
      %s1644 = sshll.u32 [#allocation27], 4
      %s1645 = int_to_ptr.vmem [resolvable:$true] %s1644
      %1647 = dma.vmem_to_hbm [thread:$0]  %s1645, 64, %s13, [#allocation26]
    $region109: #{tpu_custom_call.1} parent=1 // pred_fallthru
      _
    // Predicated region
    $region110: #{tpu_custom_call.1} parent=1 // pred_check
      _
    $region111: #{tpu_custom_call.1} parent=1 // pred_check_branch
      %1649 = sbr.rel (0) target = $region113
    $region112: #{tpu_custom_call.1} parent=1 // pred_region
      %s1651 = ssub.s32 16, 16
      %1652 = vsyncadd [#allocation29], %s1651
      %s1654 = sshll.u32 [#allocation28], 4
      %s1655 = int_to_ptr.vmem [resolvable:$true] %s1654
      %1657 = dma.vmem_to_hbm [thread:$0]  %s1655, 16, %s14, [#allocation29]
    $region113: #{tpu_custom_call.1} parent=1 // pred_fallthru
      _
    // Predicated region
    $region114: #{tpu_custom_call.1} parent=1 // pred_check
      _
    $region115: #{tpu_custom_call.1} parent=1 // pred_check_branch
      %1659 = sbr.rel (0) target = $region117
    $region116: #{tpu_custom_call.1} parent=1 // pred_region
      %s1661 = ssub.s32 16, 16
      %1662 = vsyncadd [#allocation29], %s1661
      %s1664 = sshll.u32 [#allocation30], 4
      %s1665 = int_to_ptr.vmem [resolvable:$true] %s1664
      %1667 = dma.vmem_to_hbm [thread:$0]  %s1665, 16, %s15, [#allocation29]
    $region117: #{tpu_custom_call.1} parent=1 // pred_fallthru
      _
    // Predicated region
    $region118: #{tpu_custom_call.1} parent=1 // pred_check
      _
    $region119: #{tpu_custom_call.1} parent=1 // pred_check_branch
      %1669 = sbr.rel (0) target = $region121
    $region120: #{tpu_custom_call.1} parent=1 // pred_region
      %1670 = dma.done [#allocation8], 64
    $region121: #{tpu_custom_call.1} parent=1 // pred_fallthru
      _
    // Predicated region
    $region122: #{tpu_custom_call.1} parent=1 // pred_check
      _
    $region123: #{tpu_custom_call.1} parent=1 // pred_check_branch
      %1672 = sbr.rel (0) target = $region125
    $region124: #{tpu_custom_call.1} parent=1 // pred_region
      %1673 = dma.done [#allocation26], 64
    $region125: #{tpu_custom_call.1} parent=1 // pred_fallthru
      _
    // Predicated region
    $region126: #{tpu_custom_call.1} parent=1 // pred_check
      _
    $region127: #{tpu_custom_call.1} parent=1 // pred_check_branch
      %1675 = sbr.rel (0) target = $region129
    $region128: #{tpu_custom_call.1} parent=1 // pred_region
      %1676 = dma.done [#allocation26], 64
    $region129: #{tpu_custom_call.1} parent=1 // pred_fallthru
      _
    // Predicated region
    $region130: #{tpu_custom_call.1} parent=1 // pred_check
      _
    $region131: #{tpu_custom_call.1} parent=1 // pred_check_branch
      %1678 = sbr.rel (0) target = $region133
    $region132: #{tpu_custom_call.1} parent=1 // pred_region
      %1679 = dma.done [#allocation29], 16
    $region133: #{tpu_custom_call.1} parent=1 // pred_fallthru
      _
    // Predicated region
    $region134: #{tpu_custom_call.1} parent=1 // pred_check
      _
    $region135: #{tpu_custom_call.1} parent=1 // pred_check_branch
      %1681 = sbr.rel (0) target = $region137
    $region136: #{tpu_custom_call.1} parent=1 // pred_region
      %1682 = dma.done [#allocation29], 16
    $region137: #{tpu_custom_call.1} parent=1 // pred_fallthru
      _
    %1683 = vsyncpa [#allocation7], 1
    %1684 = vsyncpa [#allocation10], 1
    %1685 = vsyncpa [#allocation13], 1
    %1686 = vsyncpa [#allocation16], 1
    %1687 = vsyncpa [#allocation19], 1
    %1688 = vsyncpa [#allocation22], 1
    %1689 = vsyncpa [#allocation8], 1
    %1690 = vsyncpa [#allocation26], 1
    %1691 = vsyncpa [#allocation29], 1

</llo_original>
